<compile_context>
chip_gen: v7x
topology: tpu7x:2x2x1
jax: 0.10.0
libtpu: 0.0.40
codegen_flags: <defaults>
</compile_context>

<pallas_src>
import math
import jax
import jax.numpy as jnp
from jax.experimental import pallas as pl
from jax.experimental.pallas import tpu as pltpu

# ----------------------------- config (small, self-consistent) -----------------------------
B = 2            # batch
S = 8            # sequence length
N = B * S        # flattened rows
H = 32           # hidden_size
FF = 64          # encoder feed-forward size
HH = 32          # head_hidden_size
C = 7            # ent_cls_num (ce_weight has 7 entries)
VOCAB = 64
LANES = 128      # lane width of every packed slab / activation tile
BLK = 128        # every weight block is a (128, 128) tile
MASK_LANE = H    # spare lane of q/k used to fold the key-padding mask into QK^T
LOG2_S = S.bit_length() - 1
assert (1 << LOG2_S) == S
assert VOCAB + S <= BLK and 3 * H <= LANES and 2 * C <= LANES

CE_WEIGHT = jnp.array([0.1, 1, 1, 1, 1, 1, 1], dtype=jnp.float32)

# ---- weight-slab block offsets (each block is a zero-padded (128,128) bf16 tile) ----
(R_EMB, R_WQ, R_WK, R_WV, R_WO, R_WF1, R_WF2,
 R_SW1, R_EW1, R_SW2, R_EW2) = (i * BLK for i in range(11))
R_TOT = 11 * BLK

# ---- vector-slab rows (bias / gamma / beta / ce_weight, zero-padded to 128 lanes) ----
(V_BQ, V_BK, V_BV, V_BO, V_BF1, V_BF2,
 V_G1, V_B1, V_G2, V_B2,
 V_SB1, V_SG, V_SBT, V_SB2,
 V_EB1, V_EG, V_EBT, V_EB2,
 V_WCE) = range(19)
V_TOT = 24

# data-slab columns (single lane-dense (N,128) f32 operand)
#   0: start label   1: end label   2: start loss mask   3: end loss mask
#   4: key-valid (attention mask)   5: token id


def _gelu(x):
    # tanh-approx GELU -> EUP slot (review item). nn.GELU() default is exact erf; the
    # deviation is ~1e-3. Swap for 0.5*x*(1+erf(x/sqrt(2))) if bit-parity is required.
    return jax.nn.gelu(x, approximate=True)


def _ln_padded(x, gamma, beta, n_real, eps):
    # x: (rows, 128) tile whose real features are lanes [0, n_real) and whose padded lanes
    # are exactly zero. Mean/var are taken over the n_real features only (padding is zero,
    # so full-lane sums are exact); gamma/beta are zero-padded so padded lanes stay zero.
    inv_n = 1.0 / n_real
    mu = jnp.sum(x, axis=-1, keepdims=True) * inv_n
    var = jnp.sum(x * x, axis=-1, keepdims=True) * inv_n - mu * mu
    var = jnp.maximum(var, 0.0)
    return (x - mu) * jax.lax.rsqrt(var + eps) * gamma + beta


# ----------------------------- fused kernel: embed + encoder + heads + loss -----------------------------
def fused_kernel(data_ref, w_ref, v_ref, out_ref):
    f32, bf16 = jnp.float32, jnp.bfloat16

    data = data_ref[...]                                                # (N, 128) f32
    lane = jax.lax.broadcasted_iota(jnp.int32, (N, LANES), 1)
    rowi = jax.lax.broadcasted_iota(jnp.int32, (N, LANES), 0)

    def wblk(r):                      # (128, 128) bf16 weight block (zero-cost view)
        return w_ref[r:r + BLK, :]

    def vrow(r):                      # (1, 128) f32 bias/gamma/beta row
        return v_ref[r:r + 1, :]

    # ---------------- in-kernel embedding lookup: fused token+position one-hot MXU matmul ----------------
    tok = data[:, 5:6].astype(jnp.int32)                                # (N, 1)
    pos = jnp.bitwise_and(rowi, S - 1) + VOCAB                          # position rows at VOCAB + (n % S)
    onehot = jnp.where(jnp.logical_or(lane == tok, lane == pos), 1.0, 0.0).astype(bf16)
    x = jnp.dot(onehot, wblk(R_EMB), preferred_element_type=f32)        # (N,128); lanes >= H are zero

    # ---------------- stand-in BERT encoder block ----------------
    xb = x.astype(bf16)
    q = jnp.dot(xb, wblk(R_WQ), preferred_element_type=f32) + vrow(V_BQ)   # 1/sqrt(H) folded; lane MASK_LANE = 1.0
    k = jnp.dot(xb, wblk(R_WK), preferred_element_type=f32) + vrow(V_BK)
    vv = jnp.dot(xb, wblk(R_WV), preferred_element_type=f32) + vrow(V_BV)

    # fold the key-padding mask into lane MASK_LANE of K: the QK^T contraction then adds
    # (key_valid - 1) * 1e9 to every score column of that key, with zero extra ops.
    neg = (data[:, 4:5] - 1.0) * 1e9                                    # (N, 1): 0 valid / -1e9 masked
    k = jnp.where(lane == MASK_LANE, neg, k)

    scores = jax.lax.dot_general(q.astype(bf16), k.astype(bf16),
                                 (((1,), (1,)), ((), ())),
                                 preferred_element_type=f32)            # (N, N) == q @ k.T
    # block-diagonal (same-example) mask, built from iota — no (N,N) bias input
    bq_i = jnp.right_shift(jax.lax.broadcasted_iota(jnp.int32, (N, N), 0), LOG2_S)
    bk_i = jnp.right_shift(jax.lax.broadcasted_iota(jnp.int32, (N, N), 1), LOG2_S)
    scores = jnp.where(bq_i == bk_i, scores, -1e9)

    scores = scores - jnp.max(scores, axis=-1, keepdims=True)
    p = jnp.exp(scores)
    p = p * pl.reciprocal(jnp.sum(p, axis=-1, keepdims=True), approx=True)

    attn = jnp.dot(p.astype(bf16), vv.astype(bf16), preferred_element_type=f32)      # (N, 128)
    o = jnp.dot(attn.astype(bf16), wblk(R_WO), preferred_element_type=f32) + vrow(V_BO)
    h = _ln_padded(x + o, vrow(V_G1), vrow(V_B1), H, 1e-12)

    ffh = jnp.dot(h.astype(bf16), wblk(R_WF1), preferred_element_type=f32) + vrow(V_BF1)
    ffh = _gelu(ffh)
    ff = jnp.dot(ffh.astype(bf16), wblk(R_WF2), preferred_element_type=f32) + vrow(V_BF2)
    enc = _ln_padded(h + ff, vrow(V_G2), vrow(V_B2), H, 1e-12)
    # detector_dropout / head_dropout: identity (eval mode)
    encb = enc.astype(bf16)

    # ---------------- start / end detector heads (separate tiles, no lane concat) ----------------
    hs = jnp.dot(encb, wblk(R_SW1), preferred_element_type=f32) + vrow(V_SB1)
    hs = _gelu(_ln_padded(hs, vrow(V_SG), vrow(V_SBT), HH, 1e-5))
    he = jnp.dot(encb, wblk(R_EW1), preferred_element_type=f32) + vrow(V_EB1)
    he = _gelu(_ln_padded(he, vrow(V_EG), vrow(V_EBT), HH, 1e-5))

    s_logits = jnp.dot(hs.astype(bf16), wblk(R_SW2), preferred_element_type=f32) + vrow(V_SB2)
    e_logits = jnp.dot(he.astype(bf16), wblk(R_EW2), preferred_element_type=f32) + vrow(V_EB2)

    # ---------------- weighted CrossEntropy (reduction='none'), masked sum / B ----------------
    wce = vrow(V_WCE)                                                   # (1, 128), lanes 0:C used
    pad = jnp.where(lane < C, 0.0, -1e30)                               # kill padded classes in the LSE

    def ce(lg, label, mask):
        oneh = (lane == label).astype(f32)
        z = lg + pad
        mx = jnp.max(z, axis=-1, keepdims=True)
        lse = jnp.log(jnp.sum(jnp.exp(z - mx), axis=-1, keepdims=True)) + mx
        picked = jnp.sum(lg * oneh, axis=-1, keepdims=True)
        w = jnp.sum(wce * oneh, axis=-1, keepdims=True)
        return mask * w * (lse - picked)                                # (N, 1)

    per_row = (ce(s_logits, data[:, 0:1].astype(jnp.int32), data[:, 2:3]) +
               ce(e_logits, data[:, 1:2].astype(jnp.int32), data[:, 3:4]))
    total = jnp.sum(per_row, axis=0, keepdims=True) * (1.0 / B)         # (1, 1)

    # single lane-dense output slab: rows 0:N start logits, rows N:2N end logits;
    # the scalar loss rides in the spare lane (row 0, lane 127) of the start-logit rows.
    is_loss_slot = jnp.logical_and(rowi == 0, lane == LANES - 1)
    out_ref[0:N, :] = jnp.where(is_loss_slot, total, s_logits)
    out_ref[N:2 * N, :] = e_logits


# ----------------------------- parameter packing (done once, at init) -----------------------------
def pack_slabs(emb, enc, heads):
    inv = 1.0 / math.sqrt(H)

    def blk(mat):
        m = jnp.asarray(mat, jnp.float32)
        return jnp.zeros((BLK, LANES), jnp.float32).at[:m.shape[0], :m.shape[1]].set(m)

    emb_blk = (jnp.zeros((BLK, LANES), jnp.float32)
               .at[0:VOCAB, 0:H].set(emb["tok"])
               .at[VOCAB:VOCAB + S, 0:H].set(emb["pos"]))

    w_slab = jnp.concatenate([
        emb_blk,
        blk(enc["wq"] * inv), blk(enc["wk"]), blk(enc["wv"]), blk(enc["wo"]),
        blk(enc["wf1"]), blk(enc["wf2"]),
        blk(heads["s_w1"]), blk(heads["e_w1"]),
        blk(heads["s_w2"]), blk(heads["e_w2"]),
    ], axis=0).astype(jnp.bfloat16)                                     # (R_TOT, 128) bf16

    def row(vec):
        v = jnp.asarray(vec, jnp.float32).reshape(-1)
        return jnp.zeros((LANES,), jnp.float32).at[:v.shape[0]].set(v)

    # Q bias: 1/sqrt(H) folded in; spare lane MASK_LANE carries the 1.0 used by the
    # key-padding-mask dot trick.
    bq_row = row(enc["bq"].reshape(-1) * inv).at[MASK_LANE].set(1.0)

    rows = [jnp.zeros((LANES,), jnp.float32)] * V_TOT
    rows[V_BQ] = bq_row
    rows[V_BK] = row(enc["bk"]); rows[V_BV] = row(enc["bv"]); rows[V_BO] = row(enc["bo"])
    rows[V_BF1] = row(enc["bf1"]); rows[V_BF2] = row(enc["bf2"])
    rows[V_G1] = row(enc["g1"]); rows[V_B1] = row(enc["b1"])
    rows[V_G2] = row(enc["g2"]); rows[V_B2] = row(enc["b2"])
    rows[V_SB1] = row(heads["s_b1"]); rows[V_SG] = row(heads["s_g"])
    rows[V_SBT] = row(heads["s_bt"]); rows[V_SB2] = row(heads["s_b2"])
    rows[V_EB1] = row(heads["e_b1"]); rows[V_EG] = row(heads["e_g"])
    rows[V_EBT] = row(heads["e_bt"]); rows[V_EB2] = row(heads["e_b2"])
    rows[V_WCE] = row(CE_WEIGHT)
    v_slab = jnp.stack(rows, axis=0)                                    # (V_TOT, 128) f32
    return w_slab, v_slab


# ----------------------------- forward pass -----------------------------
def entity_model_forward(input_ids, attn_mask, ent_labels, loss_masks, w_slab, v_slab):
    f32 = jnp.float32
    # Single lane-dense (N,128) f32 data operand; everything else happens in-kernel.
    cols = jnp.stack([
        ent_labels[:, 0, :].reshape(N).astype(f32),   # start labels
        ent_labels[:, 1, :].reshape(N).astype(f32),   # end labels
        loss_masks[:, 0, :].reshape(N).astype(f32),   # start loss mask
        loss_masks[:, 1, :].reshape(N).astype(f32),   # end loss mask
        attn_mask.reshape(N).astype(f32),             # key-valid
        input_ids.reshape(N).astype(f32),             # token ids
    ], axis=1)                                        # (N, 6)
    data = jnp.zeros((N, LANES), f32).at[:, :6].set(cols)

    out = pl.pallas_call(
        fused_kernel,
        out_shape=jax.ShapeDtypeStruct((2 * N, LANES), jnp.float32),
        in_specs=[pl.BlockSpec(memory_space=pltpu.MemorySpace.VMEM)] * 3,
        out_specs=pl.BlockSpec(memory_space=pltpu.MemorySpace.VMEM),
        cost_estimate=pl.CostEstimate(flops=6_000_000, transcendentals=12_000,
                                      bytes_accessed=420_000),
    )(data, w_slab, v_slab)

    start = out[:N, 0:C].reshape(B, S, C)
    end = out[N:2 * N, 0:C].reshape(B, S, C)
    logits = jnp.stack((start, end), axis=1)          # (B, 2, S, C), like torch.stack(dim=1)
    loss = out[0, LANES - 1]
    return {"logits": logits, "loss": loss}


# ----------------------------- parameter init (deterministic) -----------------------------
def init_params(key):
    ks = jax.random.split(key, 32)
    it = iter(range(32))

    def nrm(shape, scale=0.02):
        return (scale * jax.random.normal(ks[next(it)], shape)).astype(jnp.float32)

    emb = {"tok": nrm((VOCAB, H)), "pos": nrm((S, H))}
    enc = {
        "wq": nrm((H, H)), "bq": jnp.zeros((1, H), jnp.float32),
        "wk": nrm((H, H)), "bk": jnp.zeros((1, H), jnp.float32),
        "wv": nrm((H, H)), "bv": jnp.zeros((1, H), jnp.float32),
        "wo": nrm((H, H)), "bo": jnp.zeros((1, H), jnp.float32),
        "g1": jnp.ones((1, H), jnp.float32), "b1": jnp.zeros((1, H), jnp.float32),
        "wf1": nrm((H, FF)), "bf1": jnp.zeros((1, FF), jnp.float32),
        "wf2": nrm((FF, H)), "bf2": jnp.zeros((1, H), jnp.float32),
        "g2": jnp.ones((1, H), jnp.float32), "b2": jnp.zeros((1, H), jnp.float32),
    }
    heads = {
        "s_w1": nrm((H, HH)), "s_b1": jnp.zeros((1, HH), jnp.float32),
        "s_g": jnp.ones((1, HH), jnp.float32), "s_bt": jnp.zeros((1, HH), jnp.float32),
        "s_w2": nrm((HH, C)), "s_b2": jnp.zeros((1, C), jnp.float32),
        "e_w1": nrm((H, HH)), "e_b1": jnp.zeros((1, HH), jnp.float32),
        "e_g": jnp.ones((1, HH), jnp.float32), "e_bt": jnp.zeros((1, HH), jnp.float32),
        "e_w2": nrm((HH, C)), "e_b2": jnp.zeros((1, C), jnp.float32),
    }
    return emb, enc, heads


# ----------------------------- main -----------------------------
if __name__ == "__main__":
    key = jax.random.PRNGKey(0)
    k_par, k_ids, k_lab, k_msk = jax.random.split(key, 4)

    emb, enc, heads = init_params(k_par)
    w_slab, v_slab = pack_slabs(emb, enc, heads)       # packed once, not per call

    input_ids = jax.random.randint(k_ids, (B, S), 0, VOCAB, dtype=jnp.int32)
    attn_mask = jnp.ones((B, S), dtype=jnp.float32)
    ent_labels = jax.random.randint(k_lab, (B, 2, S), 0, C, dtype=jnp.int32)
    loss_masks = jax.random.bernoulli(k_msk, 0.7, (B, 2, S))

    fwd = jax.jit(entity_model_forward)
    out = fwd(input_ids, attn_mask, ent_labels, loss_masks, w_slab, v_slab)
    jax.block_until_ready(out)

    assert out["logits"].shape == (B, 2, S, C)
    assert out["loss"].shape == ()
    assert bool(jnp.isfinite(out["loss"]))
    print("KERNEL_OK")
</pallas_src>

<mosaic_0001>
module attributes {stable_mosaic.version = 11 : i64} {
  func.func @fused_kernel(%arg0: memref<16x128xf32, #tpu.memory_space<vmem>>, %arg1: memref<1408x128xbf16, #tpu.memory_space<vmem>>, %arg2: memref<24x128xf32, #tpu.memory_space<vmem>>, %arg3: memref<32x128xf32, #tpu.memory_space<vmem>>) attributes {dimension_semantics = [], scalar_prefetch = 0 : i64, scratch_operands = 0 : i64, tpu.core_type = #tpu.core_type<tc>} {
    %c0 = arith.constant 0 : index
    %c0_0 = arith.constant 0 : index
    %0 = vector.load %arg0[%c0, %c0_0] : memref<16x128xf32, #tpu.memory_space<vmem>>, vector<16x128xf32>
    %1 = tpu.iota {dimensions = array<i32: 1>} : vector<16x128xi32>
    %2 = tpu.iota {dimensions = array<i32: 0>} : vector<16x128xi32>
    %3 = vector.extract_strided_slice %0 {offsets = [0, 5], sizes = [16, 1], strides = [1, 1]} : vector<16x128xf32> to vector<16x1xf32>
    %4 = arith.fptosi %3 : vector<16x1xf32> to vector<16x1xi32>
    %c7_i32 = arith.constant 7 : i32
    %5 = vector.broadcast %c7_i32 : i32 to vector<16x128xi32>
    %6 = arith.andi %2, %5 : vector<16x128xi32>
    %c64_i32 = arith.constant 64 : i32
    %7 = vector.broadcast %c64_i32 : i32 to vector<16x128xi32>
    %8 = arith.addi %6, %7 : vector<16x128xi32>
    %9 = vector.broadcast %4 : vector<16x1xi32> to vector<16x128xi32>
    %10 = arith.cmpi eq, %1, %9 : vector<16x128xi32>
    %11 = arith.cmpi eq, %1, %8 : vector<16x128xi32>
    %12 = arith.ori %10, %11 : vector<16x128xi1>
    %cst = arith.constant 1.000000e+00 : f32
    %cst_1 = arith.constant 0.000000e+00 : f32
    %13 = vector.broadcast %cst : f32 to vector<16x128xf32>
    %14 = vector.broadcast %cst_1 : f32 to vector<16x128xf32>
    %15 = arith.select %12, %13, %14 : vector<16x128xi1>, vector<16x128xf32>
    %16 = arith.truncf %15 : vector<16x128xf32> to vector<16x128xbf16>
    %c0_2 = arith.constant 0 : index
    %c0_3 = arith.constant 0 : index
    %17 = vector.load %arg1[%c0_2, %c0_3] : memref<1408x128xbf16, #tpu.memory_space<vmem>>, vector<128x128xbf16>
    %cst_4 = arith.constant dense<0.000000e+00> : vector<16x128xf32>
    %18 = tpu.matmul %16, %17, %cst_4 {dimension_numbers = #tpu.dot_dimension_numbers<[1], [0], [0], [1], [0, 0, 1, 1], [], []>} : vector<16x128xbf16>, vector<128x128xbf16>, vector<16x128xf32> -> vector<16x128xf32>
    %19 = arith.truncf %18 : vector<16x128xf32> to vector<16x128xbf16>
    %c128 = arith.constant 128 : index
    %c0_5 = arith.constant 0 : index
    %20 = vector.load %arg1[%c128, %c0_5] : memref<1408x128xbf16, #tpu.memory_space<vmem>>, vector<128x128xbf16>
    %cst_6 = arith.constant dense<0.000000e+00> : vector<16x128xf32>
    %21 = tpu.matmul %19, %20, %cst_6 {dimension_numbers = #tpu.dot_dimension_numbers<[1], [0], [0], [1], [0, 0, 1, 1], [], []>} : vector<16x128xbf16>, vector<128x128xbf16>, vector<16x128xf32> -> vector<16x128xf32>
    %c0_7 = arith.constant 0 : index
    %c0_8 = arith.constant 0 : index
    %22 = vector.load %arg2[%c0_7, %c0_8] : memref<24x128xf32, #tpu.memory_space<vmem>>, vector<1x128xf32>
    %23 = vector.broadcast %22 : vector<1x128xf32> to vector<16x128xf32>
    %24 = arith.addf %21, %23 : vector<16x128xf32>
    %c256 = arith.constant 256 : index
    %c0_9 = arith.constant 0 : index
    %25 = vector.load %arg1[%c256, %c0_9] : memref<1408x128xbf16, #tpu.memory_space<vmem>>, vector<128x128xbf16>
    %cst_10 = arith.constant dense<0.000000e+00> : vector<16x128xf32>
    %26 = tpu.matmul %19, %25, %cst_10 {dimension_numbers = #tpu.dot_dimension_numbers<[1], [0], [0], [1], [0, 0, 1, 1], [], []>} : vector<16x128xbf16>, vector<128x128xbf16>, vector<16x128xf32> -> vector<16x128xf32>
    %c1 = arith.constant 1 : index
    %c0_11 = arith.constant 0 : index
    %27 = vector.load %arg2[%c1, %c0_11] : memref<24x128xf32, #tpu.memory_space<vmem>>, vector<1x128xf32>
    %28 = vector.broadcast %27 : vector<1x128xf32> to vector<16x128xf32>
    %29 = arith.addf %26, %28 : vector<16x128xf32>
    %c384 = arith.constant 384 : index
    %c0_12 = arith.constant 0 : index
    %30 = vector.load %arg1[%c384, %c0_12] : memref<1408x128xbf16, #tpu.memory_space<vmem>>, vector<128x128xbf16>
    %cst_13 = arith.constant dense<0.000000e+00> : vector<16x128xf32>
    %31 = tpu.matmul %19, %30, %cst_13 {dimension_numbers = #tpu.dot_dimension_numbers<[1], [0], [0], [1], [0, 0, 1, 1], [], []>} : vector<16x128xbf16>, vector<128x128xbf16>, vector<16x128xf32> -> vector<16x128xf32>
    %c2 = arith.constant 2 : index
    %c0_14 = arith.constant 0 : index
    %32 = vector.load %arg2[%c2, %c0_14] : memref<24x128xf32, #tpu.memory_space<vmem>>, vector<1x128xf32>
    %33 = vector.broadcast %32 : vector<1x128xf32> to vector<16x128xf32>
    %34 = arith.addf %31, %33 : vector<16x128xf32>
    %35 = vector.extract_strided_slice %0 {offsets = [0, 4], sizes = [16, 1], strides = [1, 1]} : vector<16x128xf32> to vector<16x1xf32>
    %cst_15 = arith.constant 1.000000e+00 : f32
    %36 = vector.broadcast %cst_15 : f32 to vector<16x1xf32>
    %37 = arith.subf %35, %36 : vector<16x1xf32>
    %cst_16 = arith.constant 1.000000e+09 : f32
    %38 = vector.broadcast %cst_16 : f32 to vector<16x1xf32>
    %39 = arith.mulf %37, %38 : vector<16x1xf32>
    %c32_i32 = arith.constant 32 : i32
    %40 = vector.broadcast %c32_i32 : i32 to vector<16x128xi32>
    %41 = arith.cmpi eq, %1, %40 : vector<16x128xi32>
    %42 = vector.shape_cast %39 : vector<16x1xf32> to vector<16x1xf32>
    %43 = vector.broadcast %42 : vector<16x1xf32> to vector<16x128xf32>
    %44 = arith.select %41, %43, %29 : vector<16x128xi1>, vector<16x128xf32>
    %45 = arith.truncf %24 : vector<16x128xf32> to vector<16x128xbf16>
    %46 = arith.truncf %44 : vector<16x128xf32> to vector<16x128xbf16>
    %cst_17 = arith.constant dense<0.000000e+00> : vector<16x16xf32>
    %47 = tpu.matmul %45, %46, %cst_17 {dimension_numbers = #tpu.dot_dimension_numbers<[1], [1], [0], [0], [0, 0, 1, 0], [], []>} : vector<16x128xbf16>, vector<16x128xbf16>, vector<16x16xf32> -> vector<16x16xf32>
    %48 = tpu.iota {dimensions = array<i32: 0>} : vector<16x16xi32>
    %c3_i32 = arith.constant 3 : i32
    %49 = vector.broadcast %c3_i32 : i32 to vector<16x16xi32>
    %50 = arith.shrsi %48, %49 : vector<16x16xi32>
    %51 = tpu.iota {dimensions = array<i32: 1>} : vector<16x16xi32>
    %c3_i32_18 = arith.constant 3 : i32
    %52 = vector.broadcast %c3_i32_18 : i32 to vector<16x16xi32>
    %53 = arith.shrsi %51, %52 : vector<16x16xi32>
    %54 = arith.cmpi eq, %50, %53 : vector<16x16xi32>
    %cst_19 = arith.constant -1.000000e+09 : f32
    %55 = vector.broadcast %cst_19 : f32 to vector<16x16xf32>
    %56 = arith.select %54, %47, %55 : vector<16x16xi1>, vector<16x16xf32>
    %cst_20 = arith.constant dense<0xFF800000> : vector<16xf32>
    %57 = vector.multi_reduction <maximumf>, %56, %cst_20 [1] : vector<16x16xf32> to vector<16xf32>
    %58 = vector.shape_cast %57 : vector<16xf32> to vector<16x1xf32>
    %59 = vector.broadcast %58 : vector<16x1xf32> to vector<16x16xf32>
    %60 = arith.subf %56, %59 : vector<16x16xf32>
    %61 = math.exp %60 : vector<16x16xf32>
    %cst_21 = arith.constant dense<0.000000e+00> : vector<16xf32>
    %62 = vector.multi_reduction <add>, %61, %cst_21 [1] : vector<16x16xf32> to vector<16xf32>
    %63 = vector.shape_cast %62 : vector<16xf32> to vector<16x1xf32>
    %64 = tpu.reciprocal %63 {approx = true} : vector<16x1xf32> -> vector<16x1xf32>
    %65 = vector.broadcast %64 : vector<16x1xf32> to vector<16x16xf32>
    %66 = arith.mulf %61, %65 : vector<16x16xf32>
    %67 = arith.truncf %66 : vector<16x16xf32> to vector<16x16xbf16>
    %68 = arith.truncf %34 : vector<16x128xf32> to vector<16x128xbf16>
    %cst_22 = arith.constant dense<0.000000e+00> : vector<16x128xf32>
    %69 = tpu.matmul %67, %68, %cst_22 {dimension_numbers = #tpu.dot_dimension_numbers<[1], [0], [0], [1], [0, 0, 1, 1], [], []>} : vector<16x16xbf16>, vector<16x128xbf16>, vector<16x128xf32> -> vector<16x128xf32>
    %70 = arith.truncf %69 : vector<16x128xf32> to vector<16x128xbf16>
    %c512 = arith.constant 512 : index
    %c0_23 = arith.constant 0 : index
    %71 = vector.load %arg1[%c512, %c0_23] : memref<1408x128xbf16, #tpu.memory_space<vmem>>, vector<128x128xbf16>
    %cst_24 = arith.constant dense<0.000000e+00> : vector<16x128xf32>
    %72 = tpu.matmul %70, %71, %cst_24 {dimension_numbers = #tpu.dot_dimension_numbers<[1], [0], [0], [1], [0, 0, 1, 1], [], []>} : vector<16x128xbf16>, vector<128x128xbf16>, vector<16x128xf32> -> vector<16x128xf32>
    %c3 = arith.constant 3 : index
    %c0_25 = arith.constant 0 : index
    %73 = vector.load %arg2[%c3, %c0_25] : memref<24x128xf32, #tpu.memory_space<vmem>>, vector<1x128xf32>
    %74 = vector.broadcast %73 : vector<1x128xf32> to vector<16x128xf32>
    %75 = arith.addf %72, %74 : vector<16x128xf32>
    %76 = arith.addf %18, %75 : vector<16x128xf32>
    %c6 = arith.constant 6 : index
    %c0_26 = arith.constant 0 : index
    %77 = vector.load %arg2[%c6, %c0_26] : memref<24x128xf32, #tpu.memory_space<vmem>>, vector<1x128xf32>
    %c7 = arith.constant 7 : index
    %c0_27 = arith.constant 0 : index
    %78 = vector.load %arg2[%c7, %c0_27] : memref<24x128xf32, #tpu.memory_space<vmem>>, vector<1x128xf32>
    %cst_28 = arith.constant dense<0.000000e+00> : vector<16xf32>
    %79 = vector.multi_reduction <add>, %76, %cst_28 [1] : vector<16x128xf32> to vector<16xf32>
    %80 = vector.shape_cast %79 : vector<16xf32> to vector<16x1xf32>
    %cst_29 = arith.constant 3.125000e-02 : f32
    %81 = vector.broadcast %cst_29 : f32 to vector<16x1xf32>
    %82 = arith.mulf %80, %81 : vector<16x1xf32>
    %83 = arith.mulf %76, %76 : vector<16x128xf32>
    %cst_30 = arith.constant dense<0.000000e+00> : vector<16xf32>
    %84 = vector.multi_reduction <add>, %83, %cst_30 [1] : vector<16x128xf32> to vector<16xf32>
    %85 = vector.shape_cast %84 : vector<16xf32> to vector<16x1xf32>
    %cst_31 = arith.constant 3.125000e-02 : f32
    %86 = vector.broadcast %cst_31 : f32 to vector<16x1xf32>
    %87 = arith.mulf %85, %86 : vector<16x1xf32>
    %88 = arith.mulf %82, %82 : vector<16x1xf32>
    %89 = arith.subf %87, %88 : vector<16x1xf32>
    %cst_32 = arith.constant 0.000000e+00 : f32
    %90 = vector.broadcast %cst_32 : f32 to vector<16x1xf32>
    %91 = arith.maximumf %89, %90 : vector<16x1xf32>
    %92 = vector.broadcast %82 : vector<16x1xf32> to vector<16x128xf32>
    %93 = arith.subf %76, %92 : vector<16x128xf32>
    %cst_33 = arith.constant 9.99999996E-13 : f32
    %94 = vector.broadcast %cst_33 : f32 to vector<16x1xf32>
    %95 = arith.addf %91, %94 : vector<16x1xf32>
    %96 = math.rsqrt %95 : vector<16x1xf32>
    %97 = vector.broadcast %96 : vector<16x1xf32> to vector<16x128xf32>
    %98 = arith.mulf %93, %97 : vector<16x128xf32>
    %99 = vector.broadcast %77 : vector<1x128xf32> to vector<16x128xf32>
    %100 = arith.mulf %98, %99 : vector<16x128xf32>
    %101 = vector.broadcast %78 : vector<1x128xf32> to vector<16x128xf32>
    %102 = arith.addf %100, %101 : vector<16x128xf32>
    %103 = arith.truncf %102 : vector<16x128xf32> to vector<16x128xbf16>
    %c640 = arith.constant 640 : index
    %c0_34 = arith.constant 0 : index
    %104 = vector.load %arg1[%c640, %c0_34] : memref<1408x128xbf16, #tpu.memory_space<vmem>>, vector<128x128xbf16>
    %cst_35 = arith.constant dense<0.000000e+00> : vector<16x128xf32>
    %105 = tpu.matmul %103, %104, %cst_35 {dimension_numbers = #tpu.dot_dimension_numbers<[1], [0], [0], [1], [0, 0, 1, 1], [], []>} : vector<16x128xbf16>, vector<128x128xbf16>, vector<16x128xf32> -> vector<16x128xf32>
    %c4 = arith.constant 4 : index
    %c0_36 = arith.constant 0 : index
    %106 = vector.load %arg2[%c4, %c0_36] : memref<24x128xf32, #tpu.memory_space<vmem>>, vector<1x128xf32>
    %107 = vector.broadcast %106 : vector<1x128xf32> to vector<16x128xf32>
    %108 = arith.addf %105, %107 : vector<16x128xf32>
    %109 = arith.mulf %108, %108 : vector<16x128xf32>
    %110 = arith.mulf %108, %109 : vector<16x128xf32>
    %cst_37 = arith.constant 4.471500e-02 : f32
    %111 = vector.broadcast %cst_37 : f32 to vector<16x128xf32>
    %112 = arith.mulf %111, %110 : vector<16x128xf32>
    %113 = arith.addf %108, %112 : vector<16x128xf32>
    %cst_38 = arith.constant 0.797884583 : f32
    %114 = vector.broadcast %cst_38 : f32 to vector<16x128xf32>
    %115 = arith.mulf %114, %113 : vector<16x128xf32>
    %116 = math.tanh %115 : vector<16x128xf32>
    %cst_39 = arith.constant 1.000000e+00 : f32
    %117 = vector.broadcast %cst_39 : f32 to vector<16x128xf32>
    %118 = arith.addf %117, %116 : vector<16x128xf32>
    %cst_40 = arith.constant 5.000000e-01 : f32
    %119 = vector.broadcast %cst_40 : f32 to vector<16x128xf32>
    %120 = arith.mulf %119, %118 : vector<16x128xf32>
    %121 = arith.mulf %108, %120 : vector<16x128xf32>
    %122 = arith.truncf %121 : vector<16x128xf32> to vector<16x128xbf16>
    %c768 = arith.constant 768 : index
    %c0_41 = arith.constant 0 : index
    %123 = vector.load %arg1[%c768, %c0_41] : memref<1408x128xbf16, #tpu.memory_space<vmem>>, vector<128x128xbf16>
    %cst_42 = arith.constant dense<0.000000e+00> : vector<16x128xf32>
    %124 = tpu.matmul %122, %123, %cst_42 {dimension_numbers = #tpu.dot_dimension_numbers<[1], [0], [0], [1], [0, 0, 1, 1], [], []>} : vector<16x128xbf16>, vector<128x128xbf16>, vector<16x128xf32> -> vector<16x128xf32>
    %c5 = arith.constant 5 : index
    %c0_43 = arith.constant 0 : index
    %125 = vector.load %arg2[%c5, %c0_43] : memref<24x128xf32, #tpu.memory_space<vmem>>, vector<1x128xf32>
    %126 = vector.broadcast %125 : vector<1x128xf32> to vector<16x128xf32>
    %127 = arith.addf %124, %126 : vector<16x128xf32>
    %128 = arith.addf %102, %127 : vector<16x128xf32>
    %c8 = arith.constant 8 : index
    %c0_44 = arith.constant 0 : index
    %129 = vector.load %arg2[%c8, %c0_44] : memref<24x128xf32, #tpu.memory_space<vmem>>, vector<1x128xf32>
    %c9 = arith.constant 9 : index
    %c0_45 = arith.constant 0 : index
    %130 = vector.load %arg2[%c9, %c0_45] : memref<24x128xf32, #tpu.memory_space<vmem>>, vector<1x128xf32>
    %cst_46 = arith.constant dense<0.000000e+00> : vector<16xf32>
    %131 = vector.multi_reduction <add>, %128, %cst_46 [1] : vector<16x128xf32> to vector<16xf32>
    %132 = vector.shape_cast %131 : vector<16xf32> to vector<16x1xf32>
    %cst_47 = arith.constant 3.125000e-02 : f32
    %133 = vector.broadcast %cst_47 : f32 to vector<16x1xf32>
    %134 = arith.mulf %132, %133 : vector<16x1xf32>
    %135 = arith.mulf %128, %128 : vector<16x128xf32>
    %cst_48 = arith.constant dense<0.000000e+00> : vector<16xf32>
    %136 = vector.multi_reduction <add>, %135, %cst_48 [1] : vector<16x128xf32> to vector<16xf32>
    %137 = vector.shape_cast %136 : vector<16xf32> to vector<16x1xf32>
    %cst_49 = arith.constant 3.125000e-02 : f32
    %138 = vector.broadcast %cst_49 : f32 to vector<16x1xf32>
    %139 = arith.mulf %137, %138 : vector<16x1xf32>
    %140 = arith.mulf %134, %134 : vector<16x1xf32>
    %141 = arith.subf %139, %140 : vector<16x1xf32>
    %cst_50 = arith.constant 0.000000e+00 : f32
    %142 = vector.broadcast %cst_50 : f32 to vector<16x1xf32>
    %143 = arith.maximumf %141, %142 : vector<16x1xf32>
    %144 = vector.broadcast %134 : vector<16x1xf32> to vector<16x128xf32>
    %145 = arith.subf %128, %144 : vector<16x128xf32>
    %cst_51 = arith.constant 9.99999996E-13 : f32
    %146 = vector.broadcast %cst_51 : f32 to vector<16x1xf32>
    %147 = arith.addf %143, %146 : vector<16x1xf32>
    %148 = math.rsqrt %147 : vector<16x1xf32>
    %149 = vector.broadcast %148 : vector<16x1xf32> to vector<16x128xf32>
    %150 = arith.mulf %145, %149 : vector<16x128xf32>
    %151 = vector.broadcast %129 : vector<1x128xf32> to vector<16x128xf32>
    %152 = arith.mulf %150, %151 : vector<16x128xf32>
    %153 = vector.broadcast %130 : vector<1x128xf32> to vector<16x128xf32>
    %154 = arith.addf %152, %153 : vector<16x128xf32>
    %155 = arith.truncf %154 : vector<16x128xf32> to vector<16x128xbf16>
    %c896 = arith.constant 896 : index
    %c0_52 = arith.constant 0 : index
    %156 = vector.load %arg1[%c896, %c0_52] : memref<1408x128xbf16, #tpu.memory_space<vmem>>, vector<128x128xbf16>
    %cst_53 = arith.constant dense<0.000000e+00> : vector<16x128xf32>
    %157 = tpu.matmul %155, %156, %cst_53 {dimension_numbers = #tpu.dot_dimension_numbers<[1], [0], [0], [1], [0, 0, 1, 1], [], []>} : vector<16x128xbf16>, vector<128x128xbf16>, vector<16x128xf32> -> vector<16x128xf32>
    %c10 = arith.constant 10 : index
    %c0_54 = arith.constant 0 : index
    %158 = vector.load %arg2[%c10, %c0_54] : memref<24x128xf32, #tpu.memory_space<vmem>>, vector<1x128xf32>
    %159 = vector.broadcast %158 : vector<1x128xf32> to vector<16x128xf32>
    %160 = arith.addf %157, %159 : vector<16x128xf32>
    %c11 = arith.constant 11 : index
    %c0_55 = arith.constant 0 : index
    %161 = vector.load %arg2[%c11, %c0_55] : memref<24x128xf32, #tpu.memory_space<vmem>>, vector<1x128xf32>
    %c12 = arith.constant 12 : index
    %c0_56 = arith.constant 0 : index
    %162 = vector.load %arg2[%c12, %c0_56] : memref<24x128xf32, #tpu.memory_space<vmem>>, vector<1x128xf32>
    %cst_57 = arith.constant dense<0.000000e+00> : vector<16xf32>
    %163 = vector.multi_reduction <add>, %160, %cst_57 [1] : vector<16x128xf32> to vector<16xf32>
    %164 = vector.shape_cast %163 : vector<16xf32> to vector<16x1xf32>
    %cst_58 = arith.constant 3.125000e-02 : f32
    %165 = vector.broadcast %cst_58 : f32 to vector<16x1xf32>
    %166 = arith.mulf %164, %165 : vector<16x1xf32>
    %167 = arith.mulf %160, %160 : vector<16x128xf32>
    %cst_59 = arith.constant dense<0.000000e+00> : vector<16xf32>
    %168 = vector.multi_reduction <add>, %167, %cst_59 [1] : vector<16x128xf32> to vector<16xf32>
    %169 = vector.shape_cast %168 : vector<16xf32> to vector<16x1xf32>
    %cst_60 = arith.constant 3.125000e-02 : f32
    %170 = vector.broadcast %cst_60 : f32 to vector<16x1xf32>
    %171 = arith.mulf %169, %170 : vector<16x1xf32>
    %172 = arith.mulf %166, %166 : vector<16x1xf32>
    %173 = arith.subf %171, %172 : vector<16x1xf32>
    %cst_61 = arith.constant 0.000000e+00 : f32
    %174 = vector.broadcast %cst_61 : f32 to vector<16x1xf32>
    %175 = arith.maximumf %173, %174 : vector<16x1xf32>
    %176 = vector.broadcast %166 : vector<16x1xf32> to vector<16x128xf32>
    %177 = arith.subf %160, %176 : vector<16x128xf32>
    %cst_62 = arith.constant 9.99999974E-6 : f32
    %178 = vector.broadcast %cst_62 : f32 to vector<16x1xf32>
    %179 = arith.addf %175, %178 : vector<16x1xf32>
    %180 = math.rsqrt %179 : vector<16x1xf32>
    %181 = vector.broadcast %180 : vector<16x1xf32> to vector<16x128xf32>
    %182 = arith.mulf %177, %181 : vector<16x128xf32>
    %183 = vector.broadcast %161 : vector<1x128xf32> to vector<16x128xf32>
    %184 = arith.mulf %182, %183 : vector<16x128xf32>
    %185 = vector.broadcast %162 : vector<1x128xf32> to vector<16x128xf32>
    %186 = arith.addf %184, %185 : vector<16x128xf32>
    %187 = arith.mulf %186, %186 : vector<16x128xf32>
    %188 = arith.mulf %186, %187 : vector<16x128xf32>
    %cst_63 = arith.constant 4.471500e-02 : f32
    %189 = vector.broadcast %cst_63 : f32 to vector<16x128xf32>
    %190 = arith.mulf %189, %188 : vector<16x128xf32>
    %191 = arith.addf %186, %190 : vector<16x128xf32>
    %cst_64 = arith.constant 0.797884583 : f32
    %192 = vector.broadcast %cst_64 : f32 to vector<16x128xf32>
    %193 = arith.mulf %192, %191 : vector<16x128xf32>
    %194 = math.tanh %193 : vector<16x128xf32>
    %cst_65 = arith.constant 1.000000e+00 : f32
    %195 = vector.broadcast %cst_65 : f32 to vector<16x128xf32>
    %196 = arith.addf %195, %194 : vector<16x128xf32>
    %cst_66 = arith.constant 5.000000e-01 : f32
    %197 = vector.broadcast %cst_66 : f32 to vector<16x128xf32>
    %198 = arith.mulf %197, %196 : vector<16x128xf32>
    %199 = arith.mulf %186, %198 : vector<16x128xf32>
    %c1024 = arith.constant 1024 : index
    %c0_67 = arith.constant 0 : index
    %200 = vector.load %arg1[%c1024, %c0_67] : memref<1408x128xbf16, #tpu.memory_space<vmem>>, vector<128x128xbf16>
    %cst_68 = arith.constant dense<0.000000e+00> : vector<16x128xf32>
    %201 = tpu.matmul %155, %200, %cst_68 {dimension_numbers = #tpu.dot_dimension_numbers<[1], [0], [0], [1], [0, 0, 1, 1], [], []>} : vector<16x128xbf16>, vector<128x128xbf16>, vector<16x128xf32> -> vector<16x128xf32>
    %c14 = arith.constant 14 : index
    %c0_69 = arith.constant 0 : index
    %202 = vector.load %arg2[%c14, %c0_69] : memref<24x128xf32, #tpu.memory_space<vmem>>, vector<1x128xf32>
    %203 = vector.broadcast %202 : vector<1x128xf32> to vector<16x128xf32>
    %204 = arith.addf %201, %203 : vector<16x128xf32>
    %c15 = arith.constant 15 : index
    %c0_70 = arith.constant 0 : index
    %205 = vector.load %arg2[%c15, %c0_70] : memref<24x128xf32, #tpu.memory_space<vmem>>, vector<1x128xf32>
    %c16 = arith.constant 16 : index
    %c0_71 = arith.constant 0 : index
    %206 = vector.load %arg2[%c16, %c0_71] : memref<24x128xf32, #tpu.memory_space<vmem>>, vector<1x128xf32>
    %cst_72 = arith.constant dense<0.000000e+00> : vector<16xf32>
    %207 = vector.multi_reduction <add>, %204, %cst_72 [1] : vector<16x128xf32> to vector<16xf32>
    %208 = vector.shape_cast %207 : vector<16xf32> to vector<16x1xf32>
    %cst_73 = arith.constant 3.125000e-02 : f32
    %209 = vector.broadcast %cst_73 : f32 to vector<16x1xf32>
    %210 = arith.mulf %208, %209 : vector<16x1xf32>
    %211 = arith.mulf %204, %204 : vector<16x128xf32>
    %cst_74 = arith.constant dense<0.000000e+00> : vector<16xf32>
    %212 = vector.multi_reduction <add>, %211, %cst_74 [1] : vector<16x128xf32> to vector<16xf32>
    %213 = vector.shape_cast %212 : vector<16xf32> to vector<16x1xf32>
    %cst_75 = arith.constant 3.125000e-02 : f32
    %214 = vector.broadcast %cst_75 : f32 to vector<16x1xf32>
    %215 = arith.mulf %213, %214 : vector<16x1xf32>
    %216 = arith.mulf %210, %210 : vector<16x1xf32>
    %217 = arith.subf %215, %216 : vector<16x1xf32>
    %cst_76 = arith.constant 0.000000e+00 : f32
    %218 = vector.broadcast %cst_76 : f32 to vector<16x1xf32>
    %219 = arith.maximumf %217, %218 : vector<16x1xf32>
    %220 = vector.broadcast %210 : vector<16x1xf32> to vector<16x128xf32>
    %221 = arith.subf %204, %220 : vector<16x128xf32>
    %cst_77 = arith.constant 9.99999974E-6 : f32
    %222 = vector.broadcast %cst_77 : f32 to vector<16x1xf32>
    %223 = arith.addf %219, %222 : vector<16x1xf32>
    %224 = math.rsqrt %223 : vector<16x1xf32>
    %225 = vector.broadcast %224 : vector<16x1xf32> to vector<16x128xf32>
    %226 = arith.mulf %221, %225 : vector<16x128xf32>
    %227 = vector.broadcast %205 : vector<1x128xf32> to vector<16x128xf32>
    %228 = arith.mulf %226, %227 : vector<16x128xf32>
    %229 = vector.broadcast %206 : vector<1x128xf32> to vector<16x128xf32>
    %230 = arith.addf %228, %229 : vector<16x128xf32>
    %231 = arith.mulf %230, %230 : vector<16x128xf32>
    %232 = arith.mulf %230, %231 : vector<16x128xf32>
    %cst_78 = arith.constant 4.471500e-02 : f32
    %233 = vector.broadcast %cst_78 : f32 to vector<16x128xf32>
    %234 = arith.mulf %233, %232 : vector<16x128xf32>
    %235 = arith.addf %230, %234 : vector<16x128xf32>
    %cst_79 = arith.constant 0.797884583 : f32
    %236 = vector.broadcast %cst_79 : f32 to vector<16x128xf32>
    %237 = arith.mulf %236, %235 : vector<16x128xf32>
    %238 = math.tanh %237 : vector<16x128xf32>
    %cst_80 = arith.constant 1.000000e+00 : f32
    %239 = vector.broadcast %cst_80 : f32 to vector<16x128xf32>
    %240 = arith.addf %239, %238 : vector<16x128xf32>
    %cst_81 = arith.constant 5.000000e-01 : f32
    %241 = vector.broadcast %cst_81 : f32 to vector<16x128xf32>
    %242 = arith.mulf %241, %240 : vector<16x128xf32>
    %243 = arith.mulf %230, %242 : vector<16x128xf32>
    %244 = arith.truncf %199 : vector<16x128xf32> to vector<16x128xbf16>
    %c1152 = arith.constant 1152 : index
    %c0_82 = arith.constant 0 : index
    %245 = vector.load %arg1[%c1152, %c0_82] : memref<1408x128xbf16, #tpu.memory_space<vmem>>, vector<128x128xbf16>
    %cst_83 = arith.constant dense<0.000000e+00> : vector<16x128xf32>
    %246 = tpu.matmul %244, %245, %cst_83 {dimension_numbers = #tpu.dot_dimension_numbers<[1], [0], [0], [1], [0, 0, 1, 1], [], []>} : vector<16x128xbf16>, vector<128x128xbf16>, vector<16x128xf32> -> vector<16x128xf32>
    %c13 = arith.constant 13 : index
    %c0_84 = arith.constant 0 : index
    %247 = vector.load %arg2[%c13, %c0_84] : memref<24x128xf32, #tpu.memory_space<vmem>>, vector<1x128xf32>
    %248 = vector.broadcast %247 : vector<1x128xf32> to vector<16x128xf32>
    %249 = arith.addf %246, %248 : vector<16x128xf32>
    %250 = arith.truncf %243 : vector<16x128xf32> to vector<16x128xbf16>
    %c1280 = arith.constant 1280 : index
    %c0_85 = arith.constant 0 : index
    %251 = vector.load %arg1[%c1280, %c0_85] : memref<1408x128xbf16, #tpu.memory_space<vmem>>, vector<128x128xbf16>
    %cst_86 = arith.constant dense<0.000000e+00> : vector<16x128xf32>
    %252 = tpu.matmul %250, %251, %cst_86 {dimension_numbers = #tpu.dot_dimension_numbers<[1], [0], [0], [1], [0, 0, 1, 1], [], []>} : vector<16x128xbf16>, vector<128x128xbf16>, vector<16x128xf32> -> vector<16x128xf32>
    %c17 = arith.constant 17 : index
    %c0_87 = arith.constant 0 : index
    %253 = vector.load %arg2[%c17, %c0_87] : memref<24x128xf32, #tpu.memory_space<vmem>>, vector<1x128xf32>
    %254 = vector.broadcast %253 : vector<1x128xf32> to vector<16x128xf32>
    %255 = arith.addf %252, %254 : vector<16x128xf32>
    %c18 = arith.constant 18 : index
    %c0_88 = arith.constant 0 : index
    %256 = vector.load %arg2[%c18, %c0_88] : memref<24x128xf32, #tpu.memory_space<vmem>>, vector<1x128xf32>
    %c7_i32_89 = arith.constant 7 : i32
    %257 = vector.broadcast %c7_i32_89 : i32 to vector<16x128xi32>
    %258 = arith.cmpi slt, %1, %257 : vector<16x128xi32>
    %cst_90 = arith.constant 0.000000e+00 : f32
    %cst_91 = arith.constant -1.000000e+30 : f32
    %259 = vector.broadcast %cst_90 : f32 to vector<16x128xf32>
    %260 = vector.broadcast %cst_91 : f32 to vector<16x128xf32>
    %261 = arith.select %258, %259, %260 : vector<16x128xi1>, vector<16x128xf32>
    %262 = vector.extract_strided_slice %0 {offsets = [0, 0], sizes = [16, 1], strides = [1, 1]} : vector<16x128xf32> to vector<16x1xf32>
    %263 = arith.fptosi %262 : vector<16x1xf32> to vector<16x1xi32>
    %264 = vector.extract_strided_slice %0 {offsets = [0, 2], sizes = [16, 1], strides = [1, 1]} : vector<16x128xf32> to vector<16x1xf32>
    %265 = vector.broadcast %263 : vector<16x1xi32> to vector<16x128xi32>
    %266 = arith.cmpi eq, %1, %265 : vector<16x128xi32>
    %267 = arith.extui %266 : vector<16x128xi1> to vector<16x128xi32>
    %268 = arith.sitofp %267 : vector<16x128xi32> to vector<16x128xf32>
    %269 = arith.addf %249, %261 : vector<16x128xf32>
    %cst_92 = arith.constant dense<0xFF800000> : vector<16xf32>
    %270 = vector.multi_reduction <maximumf>, %269, %cst_92 [1] : vector<16x128xf32> to vector<16xf32>
    %271 = vector.shape_cast %270 : vector<16xf32> to vector<16x1xf32>
    %272 = vector.broadcast %271 : vector<16x1xf32> to vector<16x128xf32>
    %273 = arith.subf %269, %272 : vector<16x128xf32>
    %274 = math.exp %273 : vector<16x128xf32>
    %cst_93 = arith.constant dense<0.000000e+00> : vector<16xf32>
    %275 = vector.multi_reduction <add>, %274, %cst_93 [1] : vector<16x128xf32> to vector<16xf32>
    %276 = vector.shape_cast %275 : vector<16xf32> to vector<16x1xf32>
    %277 = math.log %276 : vector<16x1xf32>
    %278 = arith.addf %277, %271 : vector<16x1xf32>
    %279 = arith.mulf %249, %268 : vector<16x128xf32>
    %cst_94 = arith.constant dense<0.000000e+00> : vector<16xf32>
    %280 = vector.multi_reduction <add>, %279, %cst_94 [1] : vector<16x128xf32> to vector<16xf32>
    %281 = vector.shape_cast %280 : vector<16xf32> to vector<16x1xf32>
    %282 = vector.broadcast %256 : vector<1x128xf32> to vector<16x128xf32>
    %283 = arith.mulf %282, %268 : vector<16x128xf32>
    %cst_95 = arith.constant dense<0.000000e+00> : vector<16xf32>
    %284 = vector.multi_reduction <add>, %283, %cst_95 [1] : vector<16x128xf32> to vector<16xf32>
    %285 = vector.shape_cast %284 : vector<16xf32> to vector<16x1xf32>
    %286 = arith.mulf %264, %285 : vector<16x1xf32>
    %287 = arith.subf %278, %281 : vector<16x1xf32>
    %288 = arith.mulf %286, %287 : vector<16x1xf32>
    %289 = vector.extract_strided_slice %0 {offsets = [0, 1], sizes = [16, 1], strides = [1, 1]} : vector<16x128xf32> to vector<16x1xf32>
    %290 = arith.fptosi %289 : vector<16x1xf32> to vector<16x1xi32>
    %291 = vector.extract_strided_slice %0 {offsets = [0, 3], sizes = [16, 1], strides = [1, 1]} : vector<16x128xf32> to vector<16x1xf32>
    %292 = vector.broadcast %290 : vector<16x1xi32> to vector<16x128xi32>
    %293 = arith.cmpi eq, %1, %292 : vector<16x128xi32>
    %294 = arith.extui %293 : vector<16x128xi1> to vector<16x128xi32>
    %295 = arith.sitofp %294 : vector<16x128xi32> to vector<16x128xf32>
    %296 = arith.addf %255, %261 : vector<16x128xf32>
    %cst_96 = arith.constant dense<0xFF800000> : vector<16xf32>
    %297 = vector.multi_reduction <maximumf>, %296, %cst_96 [1] : vector<16x128xf32> to vector<16xf32>
    %298 = vector.shape_cast %297 : vector<16xf32> to vector<16x1xf32>
    %299 = vector.broadcast %298 : vector<16x1xf32> to vector<16x128xf32>
    %300 = arith.subf %296, %299 : vector<16x128xf32>
    %301 = math.exp %300 : vector<16x128xf32>
    %cst_97 = arith.constant dense<0.000000e+00> : vector<16xf32>
    %302 = vector.multi_reduction <add>, %301, %cst_97 [1] : vector<16x128xf32> to vector<16xf32>
    %303 = vector.shape_cast %302 : vector<16xf32> to vector<16x1xf32>
    %304 = math.log %303 : vector<16x1xf32>
    %305 = arith.addf %304, %298 : vector<16x1xf32>
    %306 = arith.mulf %255, %295 : vector<16x128xf32>
    %cst_98 = arith.constant dense<0.000000e+00> : vector<16xf32>
    %307 = vector.multi_reduction <add>, %306, %cst_98 [1] : vector<16x128xf32> to vector<16xf32>
    %308 = vector.shape_cast %307 : vector<16xf32> to vector<16x1xf32>
    %309 = vector.broadcast %256 : vector<1x128xf32> to vector<16x128xf32>
    %310 = arith.mulf %309, %295 : vector<16x128xf32>
    %cst_99 = arith.constant dense<0.000000e+00> : vector<16xf32>
    %311 = vector.multi_reduction <add>, %310, %cst_99 [1] : vector<16x128xf32> to vector<16xf32>
    %312 = vector.shape_cast %311 : vector<16xf32> to vector<16x1xf32>
    %313 = arith.mulf %291, %312 : vector<16x1xf32>
    %314 = arith.subf %305, %308 : vector<16x1xf32>
    %315 = arith.mulf %313, %314 : vector<16x1xf32>
    %316 = arith.addf %288, %315 : vector<16x1xf32>
    %cst_100 = arith.constant dense<0.000000e+00> : vector<1xf32>
    %317 = vector.multi_reduction <add>, %316, %cst_100 [0] : vector<16x1xf32> to vector<1xf32>
    %318 = vector.shape_cast %317 : vector<1xf32> to vector<1x1xf32>
    %cst_101 = arith.constant 5.000000e-01 : f32
    %319 = vector.broadcast %cst_101 : f32 to vector<1x1xf32>
    %320 = arith.mulf %318, %319 : vector<1x1xf32>
    %c0_i32 = arith.constant 0 : i32
    %321 = vector.broadcast %c0_i32 : i32 to vector<16x128xi32>
    %322 = arith.cmpi eq, %2, %321 : vector<16x128xi32>
    %c127_i32 = arith.constant 127 : i32
    %323 = vector.broadcast %c127_i32 : i32 to vector<16x128xi32>
    %324 = arith.cmpi eq, %1, %323 : vector<16x128xi32>
    %325 = arith.andi %322, %324 : vector<16x128xi1>
    %326 = vector.shape_cast %320 : vector<1x1xf32> to vector<1x1xf32>
    %327 = vector.broadcast %326 : vector<1x1xf32> to vector<16x128xf32>
    %328 = arith.select %325, %327, %249 : vector<16x128xi1>, vector<16x128xf32>
    %c0_102 = arith.constant 0 : index
    %c0_103 = arith.constant 0 : index
    %329 = vector.load %arg3[%c0_102, %c0_103] : memref<32x128xf32, #tpu.memory_space<vmem>>, vector<16x128xf32>
    tpu.vector_store %arg3[%c0_102, %c0_103], %328 {strides = array<i32>} : memref<32x128xf32, #tpu.memory_space<vmem>>, vector<16x128xf32>,
    %c16_104 = arith.constant 16 : index
    %c0_105 = arith.constant 0 : index
    %330 = vector.load %arg3[%c16_104, %c0_105] : memref<32x128xf32, #tpu.memory_space<vmem>>, vector<16x128xf32>
    tpu.vector_store %arg3[%c16_104, %c0_105], %255 {strides = array<i32>} : memref<32x128xf32, #tpu.memory_space<vmem>>, vector<16x128xf32>,
    return
  }
}

</mosaic_0001>

<llo_original>
// kernel: entity_model_forward.1
$region0: #{entity_model_forward.1}
  #allocation0 [shape = 'u32[]', space=smem, size = 0x4, offset = 0x4, fixed_abs, tag = 'smem constant byte address 0x4 - core index']
  #allocation1 [shape = 'u32[144,128]{1,0:T(1,128)}', space=vmem, size = 0x12000, scoped, tag = 'internal scratch']
  %s0 = inlined_call_operand.vmem [shape: f32[16,128], index: 0, kind: input, shape index: {}]
  %s1 = inlined_call_operand.hbm [shape: bf16[1408,128], index: 1, kind: input, shape index: {}]
  %s2 = inlined_call_operand.vmem [shape: f32[24,128], index: 2, kind: input, shape index: {}]
  %s3 = inlined_call_operand.vmem [shape: f32[32,128], index: 3, kind: output, shape index: {}]
  %s4 = sld [smem:[#allocation0]]
  $region26: #{entity_model_forward.1} parent=0
    _
  %s6 = ssub.s32 1, %s4
  %s7 = scalar_select 0, %s6, %s4
  $region1: #{entity_model_forward.1} parent=0
    #allocation2 [shape = 'u8[360448]{0}', space=vmem, size = 0x58000, scoped, tag = 'input window, operand 1, single buffered']
    #allocation3 [shape = 's32[1]{0}', space=sflag, size = 0x4, scoped, tag = 'scoped memory for entity_model_forward.1']
    %8 = vsyncpa [#allocation3], 0
    // Predicated region
    $region2: #{entity_model_forward.1} parent=1 // pred_check
      _
    $region3: #{entity_model_forward.1} parent=1 // pred_check_branch
      %10 = sbr.rel (0) target = $region5
    $region4: #{entity_model_forward.1} parent=1 // pred_region
      _
    $region5: #{entity_model_forward.1} parent=1 // pred_fallthru
      _
    // Predicated region
    $region6: #{entity_model_forward.1} parent=1 // pred_check
      _
    $region7: #{entity_model_forward.1} parent=1 // pred_check_branch
      %12 = sbr.rel (0) target = $region9
    $region8: #{entity_model_forward.1} parent=1 // pred_region
      %s14 = ssub.s32 11264, 11264
      %15 = vsyncadd [#allocation3], %s14
      %s16 = sshll.u32 [#allocation2], 4
      %s17 = int_to_ptr.vmem [resolvable:$true] %s16
      %22 = dma.hbm_to_vmem [thread:$0]  %s1, 11264, %s17, [#allocation3], 64, 64, 4
    $region9: #{entity_model_forward.1} parent=1 // pred_fallthru
      _
    // Predicated region
    $region10: #{entity_model_forward.1} parent=1 // pred_check
      _
    $region11: #{entity_model_forward.1} parent=1 // pred_check_branch
      %24 = sbr.rel (0) target = $region13
    $region12: #{entity_model_forward.1} parent=1 // pred_region
      _
    $region13: #{entity_model_forward.1} parent=1 // pred_fallthru
      _
    // Predicated region
    $region14: #{entity_model_forward.1} parent=1 // pred_check
      _
    $region15: #{entity_model_forward.1} parent=1 // pred_check_branch
      %26 = sbr.rel (0) target = $region17
    $region16: #{entity_model_forward.1} parent=1 // pred_region
      %27 = dma.done [#allocation3], 11264
    $region17: #{entity_model_forward.1} parent=1 // pred_fallthru
      _
    %v29 = vld [vmem:[%s0] sm:$0xff]
    %v30 = vld [vmem:[%s0 + $0x8] sm:$0xff]
    %v31 = vlaneseq
    %v32 = vand.u32 %v31, 127
    %v33 = vlaneseq
    %v34 = vshrl.u32 %v33, 7
    %v35 = vadd.s32 %v34, 8
    %v36 = vcvt.f32.s32.to.zero.pseudo %v29
    %v37 = vcvt.f32.s32.to.zero.pseudo %v30
    %v38 = vand.u32 %v34, 7
    %v39 = vand.u32 %v35, 7
    %v40 = vadd.s32 %v38, 64
    %v41 = vadd.s32 %v39, 64
    %42 = vset.pattern.permute.xlu0 5
    %43 = vperm.xlu0 %42, %v36
    %v44 = vpop.permute.xlu0 %43
    %45 = vset.pattern.permute.xlu0 5
    %46 = vperm.xlu0 %45, %v37
    %v47 = vpop.permute.xlu0 %46
    %vm48 = vcmp.eq.s32.totalorder %v32, %v44
    %vm49 = vcmp.eq.s32.totalorder %v32, %v47
    %vm50 = vcmp.eq.s32.totalorder %v32, %v40
    %vm51 = vcmp.eq.s32.totalorder %v32, %v41
    %vm52 = vmor %vm48, %vm50
    %vm53 = vmor %vm49, %vm51
    %v54 = vsel %vm52, 1.0, 0.0
    %v55 = vsel %vm53, 1.0, 0.0
    %v56 = vpack.c.bf16 %v55, %v54
    %v57 = vld [vmem:[#allocation2] sm:$0xf]
    %v58 = vld [vmem:[#allocation2 + $0x4] sm:$0xf]
    %v59 = vld [vmem:[#allocation2 + $0x8] sm:$0xf]
    %v60 = vld [vmem:[#allocation2 + $0xc] sm:$0xf]
    %v61 = vld [vmem:[#allocation2 + $0x10] sm:$0xf]
    %v62 = vld [vmem:[#allocation2 + $0x14] sm:$0xf]
    %v63 = vld [vmem:[#allocation2 + $0x18] sm:$0xf]
    %v64 = vld [vmem:[#allocation2 + $0x1c] sm:$0xf]
    %v65 = vld [vmem:[#allocation2 + $0x20] sm:$0xf]
    %v66 = vld [vmem:[#allocation2 + $0x24] sm:$0xf]
    %v67 = vld [vmem:[#allocation2 + $0x28] sm:$0xf]
    %v68 = vld [vmem:[#allocation2 + $0x2c] sm:$0xf]
    %v69 = vld [vmem:[#allocation2 + $0x30] sm:$0xf]
    %v70 = vld [vmem:[#allocation2 + $0x34] sm:$0xf]
    %v71 = vld [vmem:[#allocation2 + $0x38] sm:$0xf]
    %v72 = vld [vmem:[#allocation2 + $0x3c] sm:$0xf]
    %v89 = vunpack.c.l.b16 %v57
    %v90 = vunpack.c.l.b16 %v58
    %v91 = vunpack.c.l.b16 %v59
    %v92 = vunpack.c.l.b16 %v60
    %v93 = vunpack.c.l.b16 %v61
    %v94 = vunpack.c.l.b16 %v62
    %v95 = vunpack.c.l.b16 %v63
    %v96 = vunpack.c.l.b16 %v64
    %v97 = vunpack.c.l.b16 %v65
    %v98 = vunpack.c.l.b16 %v66
    %v99 = vunpack.c.l.b16 %v67
    %v100 = vunpack.c.l.b16 %v68
    %v101 = vunpack.c.l.b16 %v69
    %v102 = vunpack.c.l.b16 %v70
    %v103 = vunpack.c.l.b16 %v71
    %v104 = vunpack.c.l.b16 %v72
    %v105 = vpack.c.b16 %v90, %v89
    %v106 = vpack.c.b16 %v92, %v91
    %v107 = vpack.c.b16 %v94, %v93
    %v108 = vpack.c.b16 %v96, %v95
    %v109 = vpack.c.b16 %v98, %v97
    %v110 = vpack.c.b16 %v100, %v99
    %v111 = vpack.c.b16 %v102, %v101
    %v112 = vpack.c.b16 %v104, %v103
    %121 = vmatprep.subr.bf16.mxu0 0
    %122 = vmatpush1.bf16.msra.mxu0 %v105
    %123 = vmatprep.subr.bf16.mxu0 0
    %124 = vmatpush1.bf16.msra.mxu0 %v106
    %125 = vmatprep.subr.bf16.mxu0 0
    %126 = vmatpush1.bf16.msra.mxu0 %v107
    %127 = vmatprep.subr.bf16.mxu0 0
    %128 = vmatpush1.bf16.msra.mxu0 %v108
    %129 = vmatprep.subr.bf16.mxu0 0
    %130 = vmatpush1.bf16.msra.mxu0 %v109
    %131 = vmatprep.subr.bf16.mxu0 0
    %132 = vmatpush1.bf16.msra.mxu0 %v110
    %133 = vmatprep.subr.bf16.mxu0 0
    %134 = vmatpush1.bf16.msra.mxu0 %v111
    %135 = vmatprep.subr.bf16.mxu0 0
    %136 = vmatpush1.bf16.msra.mxu0 %v112
    %137 = vmatprep.subr.bf16.mxu0 0
    %138 = vmatpush1.bf16.msra.mxu0 0
    %139 = vmatprep.subr.bf16.mxu0 0
    %140 = vmatpush1.bf16.msra.mxu0 0
    %141 = vmatprep.subr.bf16.mxu0 0
    %142 = vmatpush1.bf16.msra.mxu0 0
    %143 = vmatprep.subr.bf16.mxu0 0
    %144 = vmatpush1.bf16.msra.mxu0 0
    %145 = vmatprep.subr.bf16.mxu0 0
    %146 = vmatpush1.bf16.msra.mxu0 0
    %147 = vmatprep.subr.bf16.mxu0 0
    %148 = vmatpush1.bf16.msra.mxu0 0
    %149 = vmatprep.subr.bf16.mxu0 0
    %150 = vmatpush1.bf16.msra.mxu0 0
    %151 = vmatprep.subr.bf16.mxu0 0
    %152 = vmatpush1.bf16.msra.mxu0 0
    %153 = vmatprep.mubr.bf16.mxu0 0
    %154 = vmatmul.mubr.bf16.gmra.mrb[0].mxu0 %v56
    %v155 = vpop.f32.mrb[0].mxu0
    %v156 = vadd.f32 0.0, %v155
    %v157 = vpop.f32.mrb[0].mxu0
    %v158 = vpop.f32.mrb[0].mxu0
    %v159 = vadd.f32 0.0, %v158
    %v160 = vpop.f32.mrb[0].mxu0
    %161 = vdwg.mxu0
    %v162 = vpack.c.bf16 %v159, %v156
    %v163 = vld [vmem:[#allocation2 + $0x40] sm:$0xf]
    %v164 = vld [vmem:[#allocation2 + $0x44] sm:$0xf]
    %v165 = vld [vmem:[#allocation2 + $0x48] sm:$0xf]
    %v166 = vld [vmem:[#allocation2 + $0x4c] sm:$0xf]
    %v167 = vld [vmem:[#allocation2 + $0x50] sm:$0xf]
    %v168 = vld [vmem:[#allocation2 + $0x54] sm:$0xf]
    %v169 = vld [vmem:[#allocation2 + $0x58] sm:$0xf]
    %v170 = vld [vmem:[#allocation2 + $0x5c] sm:$0xf]
    %v171 = vld [vmem:[#allocation2 + $0x60] sm:$0xf]
    %v172 = vld [vmem:[#allocation2 + $0x64] sm:$0xf]
    %v173 = vld [vmem:[#allocation2 + $0x68] sm:$0xf]
    %v174 = vld [vmem:[#allocation2 + $0x6c] sm:$0xf]
    %v175 = vld [vmem:[#allocation2 + $0x70] sm:$0xf]
    %v176 = vld [vmem:[#allocation2 + $0x74] sm:$0xf]
    %v177 = vld [vmem:[#allocation2 + $0x78] sm:$0xf]
    %v178 = vld [vmem:[#allocation2 + $0x7c] sm:$0xf]
    %v179 = vld [vmem:[%s2] sm:$0x1]
    %v180 = vlaneseq
    %v181 = vshrl.u32 %v180, 7
    %v182 = vsub.s32 0, %v181
    %v183 = vrot.slane %v179, %v182
    %v200 = vunpack.c.l.b16 %v163
    %v201 = vunpack.c.l.b16 %v164
    %v202 = vunpack.c.l.b16 %v165
    %v203 = vunpack.c.l.b16 %v166
    %v204 = vunpack.c.l.b16 %v167
    %v205 = vunpack.c.l.b16 %v168
    %v206 = vunpack.c.l.b16 %v169
    %v207 = vunpack.c.l.b16 %v170
    %v208 = vunpack.c.l.b16 %v171
    %v209 = vunpack.c.l.b16 %v172
    %v210 = vunpack.c.l.b16 %v173
    %v211 = vunpack.c.l.b16 %v174
    %v212 = vunpack.c.l.b16 %v175
    %v213 = vunpack.c.l.b16 %v176
    %v214 = vunpack.c.l.b16 %v177
    %v215 = vunpack.c.l.b16 %v178
    %v216 = vpack.c.b16 %v201, %v200
    %v217 = vpack.c.b16 %v203, %v202
    %v218 = vpack.c.b16 %v205, %v204
    %v219 = vpack.c.b16 %v207, %v206
    %v220 = vpack.c.b16 %v209, %v208
    %v221 = vpack.c.b16 %v211, %v210
    %v222 = vpack.c.b16 %v213, %v212
    %v223 = vpack.c.b16 %v215, %v214
    %232 = vmatprep.subr.bf16.mxu0 0
    %233 = vmatpush1.bf16.msra.mxu0 %v216
    %234 = vmatprep.subr.bf16.mxu0 0
    %235 = vmatpush1.bf16.msra.mxu0 %v217
    %236 = vmatprep.subr.bf16.mxu0 0
    %237 = vmatpush1.bf16.msra.mxu0 %v218
    %238 = vmatprep.subr.bf16.mxu0 0
    %239 = vmatpush1.bf16.msra.mxu0 %v219
    %240 = vmatprep.subr.bf16.mxu0 0
    %241 = vmatpush1.bf16.msra.mxu0 %v220
    %242 = vmatprep.subr.bf16.mxu0 0
    %243 = vmatpush1.bf16.msra.mxu0 %v221
    %244 = vmatprep.subr.bf16.mxu0 0
    %245 = vmatpush1.bf16.msra.mxu0 %v222
    %246 = vmatprep.subr.bf16.mxu0 0
    %247 = vmatpush1.bf16.msra.mxu0 %v223
    %248 = vmatprep.subr.bf16.mxu0 0
    %249 = vmatpush1.bf16.msra.mxu0 0
    %250 = vmatprep.subr.bf16.mxu0 0
    %251 = vmatpush1.bf16.msra.mxu0 0
    %252 = vmatprep.subr.bf16.mxu0 0
    %253 = vmatpush1.bf16.msra.mxu0 0
    %254 = vmatprep.subr.bf16.mxu0 0
    %255 = vmatpush1.bf16.msra.mxu0 0
    %256 = vmatprep.subr.bf16.mxu0 0
    %257 = vmatpush1.bf16.msra.mxu0 0
    %258 = vmatprep.subr.bf16.mxu0 0
    %259 = vmatpush1.bf16.msra.mxu0 0
    %260 = vmatprep.subr.bf16.mxu0 0
    %261 = vmatpush1.bf16.msra.mxu0 0
    %262 = vmatprep.subr.bf16.mxu0 0
    %263 = vmatpush1.bf16.msra.mxu0 0
    %264 = vmatprep.mubr.bf16.mxu0 0
    %265 = vmatmul.mubr.bf16.gmra.mrb[0].mxu0 %v162
    %v266 = vpop.f32.mrb[0].mxu0
    %v267 = vadd.f32 %v183, %v266
    %v268 = vpop.f32.mrb[0].mxu0
    %v269 = vpop.f32.mrb[0].mxu0
    %v270 = vadd.f32 %v183, %v269
    %v271 = vpop.f32.mrb[0].mxu0
    %272 = vdwg.mxu0
    %v273 = vld [vmem:[#allocation2 + $0x80] sm:$0xf]
    %v274 = vld [vmem:[#allocation2 + $0x84] sm:$0xf]
    %v275 = vld [vmem:[#allocation2 + $0x88] sm:$0xf]
    %v276 = vld [vmem:[#allocation2 + $0x8c] sm:$0xf]
    %v277 = vld [vmem:[#allocation2 + $0x90] sm:$0xf]
    %v278 = vld [vmem:[#allocation2 + $0x94] sm:$0xf]
    %v279 = vld [vmem:[#allocation2 + $0x98] sm:$0xf]
    %v280 = vld [vmem:[#allocation2 + $0x9c] sm:$0xf]
    %v281 = vld [vmem:[#allocation2 + $0xa0] sm:$0xf]
    %v282 = vld [vmem:[#allocation2 + $0xa4] sm:$0xf]
    %v283 = vld [vmem:[#allocation2 + $0xa8] sm:$0xf]
    %v284 = vld [vmem:[#allocation2 + $0xac] sm:$0xf]
    %v285 = vld [vmem:[#allocation2 + $0xb0] sm:$0xf]
    %v286 = vld [vmem:[#allocation2 + $0xb4] sm:$0xf]
    %v287 = vld [vmem:[#allocation2 + $0xb8] sm:$0xf]
    %v288 = vld [vmem:[#allocation2 + $0xbc] sm:$0xf]
    %v289 = vld [vmem:[%s2 + $0x1] sm:$0x1]
    %v290 = vlaneseq
    %v291 = vshrl.u32 %v290, 7
    %v292 = vsub.s32 0, %v291
    %v293 = vrot.slane %v289, %v292
    %v310 = vunpack.c.l.b16 %v273
    %v311 = vunpack.c.l.b16 %v274
    %v312 = vunpack.c.l.b16 %v275
    %v313 = vunpack.c.l.b16 %v276
    %v314 = vunpack.c.l.b16 %v277
    %v315 = vunpack.c.l.b16 %v278
    %v316 = vunpack.c.l.b16 %v279
    %v317 = vunpack.c.l.b16 %v280
    %v318 = vunpack.c.l.b16 %v281
    %v319 = vunpack.c.l.b16 %v282
    %v320 = vunpack.c.l.b16 %v283
    %v321 = vunpack.c.l.b16 %v284
    %v322 = vunpack.c.l.b16 %v285
    %v323 = vunpack.c.l.b16 %v286
    %v324 = vunpack.c.l.b16 %v287
    %v325 = vunpack.c.l.b16 %v288
    %v326 = vpack.c.b16 %v311, %v310
    %v327 = vpack.c.b16 %v313, %v312
    %v328 = vpack.c.b16 %v315, %v314
    %v329 = vpack.c.b16 %v317, %v316
    %v330 = vpack.c.b16 %v319, %v318
    %v331 = vpack.c.b16 %v321, %v320
    %v332 = vpack.c.b16 %v323, %v322
    %v333 = vpack.c.b16 %v325, %v324
    %342 = vmatprep.subr.bf16.mxu0 0
    %343 = vmatpush1.bf16.msra.mxu0 %v326
    %344 = vmatprep.subr.bf16.mxu0 0
    %345 = vmatpush1.bf16.msra.mxu0 %v327
    %346 = vmatprep.subr.bf16.mxu0 0
    %347 = vmatpush1.bf16.msra.mxu0 %v328
    %348 = vmatprep.subr.bf16.mxu0 0
    %349 = vmatpush1.bf16.msra.mxu0 %v329
    %350 = vmatprep.subr.bf16.mxu0 0
    %351 = vmatpush1.bf16.msra.mxu0 %v330
    %352 = vmatprep.subr.bf16.mxu0 0
    %353 = vmatpush1.bf16.msra.mxu0 %v331
    %354 = vmatprep.subr.bf16.mxu0 0
    %355 = vmatpush1.bf16.msra.mxu0 %v332
    %356 = vmatprep.subr.bf16.mxu0 0
    %357 = vmatpush1.bf16.msra.mxu0 %v333
    %358 = vmatprep.subr.bf16.mxu0 0
    %359 = vmatpush1.bf16.msra.mxu0 0
    %360 = vmatprep.subr.bf16.mxu0 0
    %361 = vmatpush1.bf16.msra.mxu0 0
    %362 = vmatprep.subr.bf16.mxu0 0
    %363 = vmatpush1.bf16.msra.mxu0 0
    %364 = vmatprep.subr.bf16.mxu0 0
    %365 = vmatpush1.bf16.msra.mxu0 0
    %366 = vmatprep.subr.bf16.mxu0 0
    %367 = vmatpush1.bf16.msra.mxu0 0
    %368 = vmatprep.subr.bf16.mxu0 0
    %369 = vmatpush1.bf16.msra.mxu0 0
    %370 = vmatprep.subr.bf16.mxu0 0
    %371 = vmatpush1.bf16.msra.mxu0 0
    %372 = vmatprep.subr.bf16.mxu0 0
    %373 = vmatpush1.bf16.msra.mxu0 0
    %374 = vmatprep.mubr.bf16.mxu0 0
    %375 = vmatmul.mubr.bf16.gmra.mrb[0].mxu0 %v162
    %v376 = vpop.f32.mrb[0].mxu0
    %v377 = vadd.f32 %v293, %v376
    %v378 = vpop.f32.mrb[0].mxu0
    %v379 = vpop.f32.mrb[0].mxu0
    %v380 = vadd.f32 %v293, %v379
    %v381 = vpop.f32.mrb[0].mxu0
    %382 = vdwg.mxu0
    %v383 = vld [vmem:[#allocation2 + $0xc0] sm:$0xf]
    %v384 = vld [vmem:[#allocation2 + $0xc4] sm:$0xf]
    %v385 = vld [vmem:[#allocation2 + $0xc8] sm:$0xf]
    %v386 = vld [vmem:[#allocation2 + $0xcc] sm:$0xf]
    %v387 = vld [vmem:[#allocation2 + $0xd0] sm:$0xf]
    %v388 = vld [vmem:[#allocation2 + $0xd4] sm:$0xf]
    %v389 = vld [vmem:[#allocation2 + $0xd8] sm:$0xf]
    %v390 = vld [vmem:[#allocation2 + $0xdc] sm:$0xf]
    %v391 = vld [vmem:[#allocation2 + $0xe0] sm:$0xf]
    %v392 = vld [vmem:[#allocation2 + $0xe4] sm:$0xf]
    %v393 = vld [vmem:[#allocation2 + $0xe8] sm:$0xf]
    %v394 = vld [vmem:[#allocation2 + $0xec] sm:$0xf]
    %v395 = vld [vmem:[#allocation2 + $0xf0] sm:$0xf]
    %v396 = vld [vmem:[#allocation2 + $0xf4] sm:$0xf]
    %v397 = vld [vmem:[#allocation2 + $0xf8] sm:$0xf]
    %v398 = vld [vmem:[#allocation2 + $0xfc] sm:$0xf]
    %v399 = vld [vmem:[%s2 + $0x2] sm:$0x1]
    %v400 = vlaneseq
    %v401 = vshrl.u32 %v400, 7
    %v402 = vsub.s32 0, %v401
    %v403 = vrot.slane %v399, %v402
    %v420 = vunpack.c.l.b16 %v383
    %v421 = vunpack.c.l.b16 %v384
    %v422 = vunpack.c.l.b16 %v385
    %v423 = vunpack.c.l.b16 %v386
    %v424 = vunpack.c.l.b16 %v387
    %v425 = vunpack.c.l.b16 %v388
    %v426 = vunpack.c.l.b16 %v389
    %v427 = vunpack.c.l.b16 %v390
    %v428 = vunpack.c.l.b16 %v391
    %v429 = vunpack.c.l.b16 %v392
    %v430 = vunpack.c.l.b16 %v393
    %v431 = vunpack.c.l.b16 %v394
    %v432 = vunpack.c.l.b16 %v395
    %v433 = vunpack.c.l.b16 %v396
    %v434 = vunpack.c.l.b16 %v397
    %v435 = vunpack.c.l.b16 %v398
    %v436 = vpack.c.b16 %v421, %v420
    %v437 = vpack.c.b16 %v423, %v422
    %v438 = vpack.c.b16 %v425, %v424
    %v439 = vpack.c.b16 %v427, %v426
    %v440 = vpack.c.b16 %v429, %v428
    %v441 = vpack.c.b16 %v431, %v430
    %v442 = vpack.c.b16 %v433, %v432
    %v443 = vpack.c.b16 %v435, %v434
    %452 = vmatprep.subr.bf16.mxu0 0
    %453 = vmatpush1.bf16.msra.mxu0 %v436
    %454 = vmatprep.subr.bf16.mxu0 0
    %455 = vmatpush1.bf16.msra.mxu0 %v437
    %456 = vmatprep.subr.bf16.mxu0 0
    %457 = vmatpush1.bf16.msra.mxu0 %v438
    %458 = vmatprep.subr.bf16.mxu0 0
    %459 = vmatpush1.bf16.msra.mxu0 %v439
    %460 = vmatprep.subr.bf16.mxu0 0
    %461 = vmatpush1.bf16.msra.mxu0 %v440
    %462 = vmatprep.subr.bf16.mxu0 0
    %463 = vmatpush1.bf16.msra.mxu0 %v441
    %464 = vmatprep.subr.bf16.mxu0 0
    %465 = vmatpush1.bf16.msra.mxu0 %v442
    %466 = vmatprep.subr.bf16.mxu0 0
    %467 = vmatpush1.bf16.msra.mxu0 %v443
    %468 = vmatprep.subr.bf16.mxu0 0
    %469 = vmatpush1.bf16.msra.mxu0 0
    %470 = vmatprep.subr.bf16.mxu0 0
    %471 = vmatpush1.bf16.msra.mxu0 0
    %472 = vmatprep.subr.bf16.mxu0 0
    %473 = vmatpush1.bf16.msra.mxu0 0
    %474 = vmatprep.subr.bf16.mxu0 0
    %475 = vmatpush1.bf16.msra.mxu0 0
    %476 = vmatprep.subr.bf16.mxu0 0
    %477 = vmatpush1.bf16.msra.mxu0 0
    %478 = vmatprep.subr.bf16.mxu0 0
    %479 = vmatpush1.bf16.msra.mxu0 0
    %480 = vmatprep.subr.bf16.mxu0 0
    %481 = vmatpush1.bf16.msra.mxu0 0
    %482 = vmatprep.subr.bf16.mxu0 0
    %483 = vmatpush1.bf16.msra.mxu0 0
    %484 = vmatprep.mubr.bf16.mxu0 0
    %485 = vmatmul.mubr.bf16.gmra.mrb[0].mxu0 %v162
    %v486 = vpop.f32.mrb[0].mxu0
    %v487 = vadd.f32 %v403, %v486
    %v488 = vpop.f32.mrb[0].mxu0
    %v489 = vpop.f32.mrb[0].mxu0
    %v490 = vadd.f32 %v403, %v489
    %v491 = vpop.f32.mrb[0].mxu0
    %492 = vdwg.mxu0
    %v493 = vsub.f32 %v29, 1.0
    %v494 = vsub.f32 %v30, 1.0
    %v495 = vmul.f32 %v493, 1e+09
    %v496 = vmul.f32 %v494, 1e+09
    %vm497 = vcmp.eq.s32.totalorder %v32, 32
    %499 = vset.pattern.permute.xlu0 4
    %500 = vperm.xlu0 %499, %v495
    %v501 = vpop.permute.xlu0 %500
    %504 = vset.pattern.permute.xlu0 4
    %505 = vperm.xlu0 %504, %v496
    %v506 = vpop.permute.xlu0 %505
    %v508 = vsel %vm497, %v501, %v377
    %v509 = vsel %vm497, %v506, %v380
    %v510 = vpack.c.bf16 %v270, %v267
    %v511 = vpack.c.bf16 %v509, %v508
    %512 = vmatprep.subr.bf16.mxu0 0
    %513 = vmatpush1.bf16.xpose.msra.mxu0 %v511
    %514 = vmatprep.subr.bf16.mxu0 0
    %515 = vmatpush1.bf16.xpose.msra.mxu0 0
    %516 = vmatprep.subr.bf16.mxu0 0
    %517 = vmatpush1.bf16.xpose.msra.mxu0 0
    %518 = vmatprep.subr.bf16.mxu0 0
    %519 = vmatpush1.bf16.xpose.msra.mxu0 0
    %520 = vmatprep.subr.bf16.mxu0 0
    %521 = vmatpush1.bf16.xpose.msra.mxu0 0
    %522 = vmatprep.subr.bf16.mxu0 0
    %523 = vmatpush1.bf16.xpose.msra.mxu0 0
    %524 = vmatprep.subr.bf16.mxu0 0
    %525 = vmatpush1.bf16.xpose.msra.mxu0 0
    %526 = vmatprep.subr.bf16.mxu0 0
    %527 = vmatpush1.bf16.xpose.msra.mxu0 0
    %528 = vmatprep.subr.bf16.mxu0 0
    %529 = vmatpush1.bf16.xpose.msra.mxu0 0
    %530 = vmatprep.subr.bf16.mxu0 0
    %531 = vmatpush1.bf16.xpose.msra.mxu0 0
    %532 = vmatprep.subr.bf16.mxu0 0
    %533 = vmatpush1.bf16.xpose.msra.mxu0 0
    %534 = vmatprep.subr.bf16.mxu0 0
    %535 = vmatpush1.bf16.xpose.msra.mxu0 0
    %536 = vmatprep.subr.bf16.mxu0 0
    %537 = vmatpush1.bf16.xpose.msra.mxu0 0
    %538 = vmatprep.subr.bf16.mxu0 0
    %539 = vmatpush1.bf16.xpose.msra.mxu0 0
    %540 = vmatprep.subr.bf16.mxu0 0
    %541 = vmatpush1.bf16.xpose.msra.mxu0 0
    %542 = vmatprep.subr.bf16.mxu0 0
    %543 = vmatpush1.bf16.xpose.msra.mxu0 0
    %544 = vmatprep.mubr.bf16.mxu0 0
    %545 = vmatmul.mubr.bf16.gmra.mrb[0].mxu0 %v510
    %v546 = vpop.f32.mrb[0].mxu0
    %v547 = vadd.f32 0.0, %v546
    %v548 = vpop.f32.mrb[0].mxu0
    %v549 = vpop.f32.mrb[0].mxu0
    %v550 = vadd.f32 0.0, %v549
    %v551 = vpop.f32.mrb[0].mxu0
    %552 = vdwg.mxu0
    %v553 = vshra.s32 %v34, 3
    %v554 = vshra.s32 %v35, 3
    %v555 = vshra.s32 %v32, 3
    %vm556 = vcmp.eq.s32.totalorder %v553, %v555
    %vm557 = vcmp.eq.s32.totalorder %v554, %v555
    %v558 = vsel %vm556, %v547, -1e+09
    %v559 = vsel %vm557, %v550, -1e+09
    %vm560 = vcmask 130048
    %v561 = vsel %vm560, %v558, -inf
    %562 = vmax.xlane.f32.xlu0 %v561
    %v563 = vpop.xlane.xlu0 %562
    %v564 = vsel %vm560, %v559, -inf
    %565 = vmax.xlane.f32.xlu0 %v564
    %v566 = vpop.xlane.xlu0 %565
    %v567 = vsub.f32 %v558, %v563
    %v568 = vsub.f32 %v559, %v566
    %v569 = vmul.f32 %v567, 1.442695
    %v570 = vpow.pop %v569
    %v571 = vmul.f32 %v568, 1.442695
    %v572 = vpow.pop %v571
    %v573 = vsel %vm560, %v570, 0.0
    %574 = vadd.xlane.f32.xlu0 %v573
    %v575 = vpop.xlane.xlu0 %574
    %v576 = vsel %vm560, %v572, 0.0
    %577 = vadd.xlane.f32.xlu0 %v576
    %v578 = vpop.xlane.xlu0 %577
    %v579 = vrcp.pop %v575
    %v580 = vrcp.pop %v578
    %v581 = vmul.f32 %v570, %v579
    %v582 = vmul.f32 %v572, %v580
    %v583 = vpack.c.bf16 %v582, %v581
    %v584 = vpack.c.bf16 %v490, %v487
    %v586 = vsel %vm560, %v583, 0
    %588 = vmatprep.subr.bf16.mxu0 0
    %589 = vmatpush1.bf16.msra.mxu0 %v584
    %590 = vmatprep.subr.bf16.mxu0 0
    %591 = vmatpush1.bf16.msra.mxu0 0
    %592 = vmatprep.subr.bf16.mxu0 0
    %593 = vmatpush1.bf16.msra.mxu0 0
    %594 = vmatprep.subr.bf16.mxu0 0
    %595 = vmatpush1.bf16.msra.mxu0 0
    %596 = vmatprep.subr.bf16.mxu0 0
    %597 = vmatpush1.bf16.msra.mxu0 0
    %598 = vmatprep.subr.bf16.mxu0 0
    %599 = vmatpush1.bf16.msra.mxu0 0
    %600 = vmatprep.subr.bf16.mxu0 0
    %601 = vmatpush1.bf16.msra.mxu0 0
    %602 = vmatprep.subr.bf16.mxu0 0
    %603 = vmatpush1.bf16.msra.mxu0 0
    %604 = vmatprep.subr.bf16.mxu0 0
    %605 = vmatpush1.bf16.msra.mxu0 0
    %606 = vmatprep.subr.bf16.mxu0 0
    %607 = vmatpush1.bf16.msra.mxu0 0
    %608 = vmatprep.subr.bf16.mxu0 0
    %609 = vmatpush1.bf16.msra.mxu0 0
    %610 = vmatprep.subr.bf16.mxu0 0
    %611 = vmatpush1.bf16.msra.mxu0 0
    %612 = vmatprep.subr.bf16.mxu0 0
    %613 = vmatpush1.bf16.msra.mxu0 0
    %614 = vmatprep.subr.bf16.mxu0 0
    %615 = vmatpush1.bf16.msra.mxu0 0
    %616 = vmatprep.subr.bf16.mxu0 0
    %617 = vmatpush1.bf16.msra.mxu0 0
    %618 = vmatprep.subr.bf16.mxu0 0
    %619 = vmatpush1.bf16.msra.mxu0 0
    %620 = vmatprep.mubr.bf16.mxu0 0
    %621 = vmatmul.mubr.bf16.gmra.mrb[0].mxu0 %v586
    %v622 = vpop.f32.mrb[0].mxu0
    %v623 = vadd.f32 0.0, %v622
    %v624 = vpop.f32.mrb[0].mxu0
    %v625 = vpop.f32.mrb[0].mxu0
    %v626 = vadd.f32 0.0, %v625
    %v627 = vpop.f32.mrb[0].mxu0
    %628 = vdwg.mxu0
    %v629 = vpack.c.bf16 %v626, %v623
    %v630 = vld [vmem:[#allocation2 + $0x100] sm:$0xf]
    %v631 = vld [vmem:[#allocation2 + $0x104] sm:$0xf]
    %v632 = vld [vmem:[#allocation2 + $0x108] sm:$0xf]
    %v633 = vld [vmem:[#allocation2 + $0x10c] sm:$0xf]
    %v634 = vld [vmem:[#allocation2 + $0x110] sm:$0xf]
    %v635 = vld [vmem:[#allocation2 + $0x114] sm:$0xf]
    %v636 = vld [vmem:[#allocation2 + $0x118] sm:$0xf]
    %v637 = vld [vmem:[#allocation2 + $0x11c] sm:$0xf]
    %v638 = vld [vmem:[#allocation2 + $0x120] sm:$0xf]
    %v639 = vld [vmem:[#allocation2 + $0x124] sm:$0xf]
    %v640 = vld [vmem:[#allocation2 + $0x128] sm:$0xf]
    %v641 = vld [vmem:[#allocation2 + $0x12c] sm:$0xf]
    %v642 = vld [vmem:[#allocation2 + $0x130] sm:$0xf]
    %v643 = vld [vmem:[#allocation2 + $0x134] sm:$0xf]
    %v644 = vld [vmem:[#allocation2 + $0x138] sm:$0xf]
    %v645 = vld [vmem:[#allocation2 + $0x13c] sm:$0xf]
    %v646 = vld [vmem:[%s2 + $0x3] sm:$0x1]
    %v647 = vlaneseq
    %v648 = vshrl.u32 %v647, 7
    %v649 = vsub.s32 0, %v648
    %v650 = vrot.slane %v646, %v649
    %v667 = vunpack.c.l.b16 %v630
    %v668 = vunpack.c.l.b16 %v631
    %v669 = vunpack.c.l.b16 %v632
    %v670 = vunpack.c.l.b16 %v633
    %v671 = vunpack.c.l.b16 %v634
    %v672 = vunpack.c.l.b16 %v635
    %v673 = vunpack.c.l.b16 %v636
    %v674 = vunpack.c.l.b16 %v637
    %v675 = vunpack.c.l.b16 %v638
    %v676 = vunpack.c.l.b16 %v639
    %v677 = vunpack.c.l.b16 %v640
    %v678 = vunpack.c.l.b16 %v641
    %v679 = vunpack.c.l.b16 %v642
    %v680 = vunpack.c.l.b16 %v643
    %v681 = vunpack.c.l.b16 %v644
    %v682 = vunpack.c.l.b16 %v645
    %v683 = vpack.c.b16 %v668, %v667
    %v684 = vpack.c.b16 %v670, %v669
    %v685 = vpack.c.b16 %v672, %v671
    %v686 = vpack.c.b16 %v674, %v673
    %v687 = vpack.c.b16 %v676, %v675
    %v688 = vpack.c.b16 %v678, %v677
    %v689 = vpack.c.b16 %v680, %v679
    %v690 = vpack.c.b16 %v682, %v681
    %699 = vmatprep.subr.bf16.mxu0 0
    %700 = vmatpush1.bf16.msra.mxu0 %v683
    %701 = vmatprep.subr.bf16.mxu0 0
    %702 = vmatpush1.bf16.msra.mxu0 %v684
    %703 = vmatprep.subr.bf16.mxu0 0
    %704 = vmatpush1.bf16.msra.mxu0 %v685
    %705 = vmatprep.subr.bf16.mxu0 0
    %706 = vmatpush1.bf16.msra.mxu0 %v686
    %707 = vmatprep.subr.bf16.mxu0 0
    %708 = vmatpush1.bf16.msra.mxu0 %v687
    %709 = vmatprep.subr.bf16.mxu0 0
    %710 = vmatpush1.bf16.msra.mxu0 %v688
    %711 = vmatprep.subr.bf16.mxu0 0
    %712 = vmatpush1.bf16.msra.mxu0 %v689
    %713 = vmatprep.subr.bf16.mxu0 0
    %714 = vmatpush1.bf16.msra.mxu0 %v690
    %715 = vmatprep.subr.bf16.mxu0 0
    %716 = vmatpush1.bf16.msra.mxu0 0
    %717 = vmatprep.subr.bf16.mxu0 0
    %718 = vmatpush1.bf16.msra.mxu0 0
    %719 = vmatprep.subr.bf16.mxu0 0
    %720 = vmatpush1.bf16.msra.mxu0 0
    %721 = vmatprep.subr.bf16.mxu0 0
    %722 = vmatpush1.bf16.msra.mxu0 0
    %723 = vmatprep.subr.bf16.mxu0 0
    %724 = vmatpush1.bf16.msra.mxu0 0
    %725 = vmatprep.subr.bf16.mxu0 0
    %726 = vmatpush1.bf16.msra.mxu0 0
    %727 = vmatprep.subr.bf16.mxu0 0
    %728 = vmatpush1.bf16.msra.mxu0 0
    %729 = vmatprep.subr.bf16.mxu0 0
    %730 = vmatpush1.bf16.msra.mxu0 0
    %731 = vmatprep.mubr.bf16.mxu0 0
    %732 = vmatmul.mubr.bf16.gmra.mrb[0].mxu0 %v629
    %v733 = vpop.f32.mrb[0].mxu0
    %v734 = vadd.f32 %v650, %v733
    %v735 = vpop.f32.mrb[0].mxu0
    %v736 = vpop.f32.mrb[0].mxu0
    %v737 = vadd.f32 %v650, %v736
    %v738 = vpop.f32.mrb[0].mxu0
    %739 = vdwg.mxu0
    %v740 = vadd.f32 %v156, %v734
    %v741 = vadd.f32 %v159, %v737
    %v742 = vld [vmem:[%s2 + $0x6] sm:$0x1]
    %v743 = vld [vmem:[%s2 + $0x7] sm:$0x1]
    %744 = vadd.xlane.f32.xlu0 %v740
    %v745 = vpop.xlane.xlu0 %744
    %746 = vadd.xlane.f32.xlu0 %v741
    %v747 = vpop.xlane.xlu0 %746
    %v748 = vmul.f32 %v745, 0.03125
    %v749 = vmul.f32 %v747, 0.03125
    %v750 = vmul.f32 %v740, %v740
    %v751 = vmul.f32 %v741, %v741
    %752 = vadd.xlane.f32.xlu0 %v750
    %v753 = vpop.xlane.xlu0 %752
    %754 = vadd.xlane.f32.xlu0 %v751
    %v755 = vpop.xlane.xlu0 %754
    %v756 = vmul.f32 %v753, 0.03125
    %v757 = vmul.f32 %v755, 0.03125
    %v758 = vmul.f32 %v748, %v748
    %v759 = vmul.f32 %v749, %v749
    %v760 = vsub.f32 %v756, %v758
    %v761 = vsub.f32 %v757, %v759
    %v762 = vmax.f32 %v760, 0.0
    %v763 = vmax.f32 %v761, 0.0
    %v764 = vsub.f32 %v740, %v748
    %v765 = vsub.f32 %v741, %v749
    %v766 = vadd.f32 %v762, 1e-12
    %v767 = vadd.f32 %v763, 1e-12
    %v768 = vrsqrt.pop %v766
    %v769 = vrsqrt.pop %v767
    %v770 = vmul.f32 %v764, %v768
    %v771 = vmul.f32 %v765, %v769
    %v772 = vlaneseq
    %v773 = vshrl.u32 %v772, 7
    %v774 = vsub.s32 0, %v773
    %v775 = vrot.slane %v742, %v774
    %v776 = vmul.f32 %v770, %v775
    %v777 = vmul.f32 %v771, %v775
    %v778 = vlaneseq
    %v779 = vshrl.u32 %v778, 7
    %v780 = vsub.s32 0, %v779
    %v781 = vrot.slane %v743, %v780
    %v782 = vadd.f32 %v776, %v781
    %v783 = vadd.f32 %v777, %v781
    %v784 = vpack.c.bf16 %v783, %v782
    %v785 = vld [vmem:[#allocation2 + $0x140] sm:$0xf]
    %v786 = vld [vmem:[#allocation2 + $0x144] sm:$0xf]
    %v787 = vld [vmem:[#allocation2 + $0x148] sm:$0xf]
    %v788 = vld [vmem:[#allocation2 + $0x14c] sm:$0xf]
    %v789 = vld [vmem:[#allocation2 + $0x150] sm:$0xf]
    %v790 = vld [vmem:[#allocation2 + $0x154] sm:$0xf]
    %v791 = vld [vmem:[#allocation2 + $0x158] sm:$0xf]
    %v792 = vld [vmem:[#allocation2 + $0x15c] sm:$0xf]
    %v793 = vld [vmem:[#allocation2 + $0x160] sm:$0xf]
    %v794 = vld [vmem:[#allocation2 + $0x164] sm:$0xf]
    %v795 = vld [vmem:[#allocation2 + $0x168] sm:$0xf]
    %v796 = vld [vmem:[#allocation2 + $0x16c] sm:$0xf]
    %v797 = vld [vmem:[#allocation2 + $0x170] sm:$0xf]
    %v798 = vld [vmem:[#allocation2 + $0x174] sm:$0xf]
    %v799 = vld [vmem:[#allocation2 + $0x178] sm:$0xf]
    %v800 = vld [vmem:[#allocation2 + $0x17c] sm:$0xf]
    %v801 = vld [vmem:[%s2 + $0x4] sm:$0x1]
    %v802 = vlaneseq
    %v803 = vshrl.u32 %v802, 7
    %v804 = vsub.s32 0, %v803
    %v805 = vrot.slane %v801, %v804
    %v822 = vunpack.c.l.b16 %v785
    %v823 = vunpack.c.l.b16 %v786
    %v824 = vunpack.c.l.b16 %v787
    %v825 = vunpack.c.l.b16 %v788
    %v826 = vunpack.c.l.b16 %v789
    %v827 = vunpack.c.l.b16 %v790
    %v828 = vunpack.c.l.b16 %v791
    %v829 = vunpack.c.l.b16 %v792
    %v830 = vunpack.c.l.b16 %v793
    %v831 = vunpack.c.l.b16 %v794
    %v832 = vunpack.c.l.b16 %v795
    %v833 = vunpack.c.l.b16 %v796
    %v834 = vunpack.c.l.b16 %v797
    %v835 = vunpack.c.l.b16 %v798
    %v836 = vunpack.c.l.b16 %v799
    %v837 = vunpack.c.l.b16 %v800
    %v838 = vpack.c.b16 %v823, %v822
    %v839 = vpack.c.b16 %v825, %v824
    %v840 = vpack.c.b16 %v827, %v826
    %v841 = vpack.c.b16 %v829, %v828
    %v842 = vpack.c.b16 %v831, %v830
    %v843 = vpack.c.b16 %v833, %v832
    %v844 = vpack.c.b16 %v835, %v834
    %v845 = vpack.c.b16 %v837, %v836
    %854 = vmatprep.subr.bf16.mxu0 0
    %855 = vmatpush1.bf16.msra.mxu0 %v838
    %856 = vmatprep.subr.bf16.mxu0 0
    %857 = vmatpush1.bf16.msra.mxu0 %v839
    %858 = vmatprep.subr.bf16.mxu0 0
    %859 = vmatpush1.bf16.msra.mxu0 %v840
    %860 = vmatprep.subr.bf16.mxu0 0
    %861 = vmatpush1.bf16.msra.mxu0 %v841
    %862 = vmatprep.subr.bf16.mxu0 0
    %863 = vmatpush1.bf16.msra.mxu0 %v842
    %864 = vmatprep.subr.bf16.mxu0 0
    %865 = vmatpush1.bf16.msra.mxu0 %v843
    %866 = vmatprep.subr.bf16.mxu0 0
    %867 = vmatpush1.bf16.msra.mxu0 %v844
    %868 = vmatprep.subr.bf16.mxu0 0
    %869 = vmatpush1.bf16.msra.mxu0 %v845
    %870 = vmatprep.subr.bf16.mxu0 0
    %871 = vmatpush1.bf16.msra.mxu0 0
    %872 = vmatprep.subr.bf16.mxu0 0
    %873 = vmatpush1.bf16.msra.mxu0 0
    %874 = vmatprep.subr.bf16.mxu0 0
    %875 = vmatpush1.bf16.msra.mxu0 0
    %876 = vmatprep.subr.bf16.mxu0 0
    %877 = vmatpush1.bf16.msra.mxu0 0
    %878 = vmatprep.subr.bf16.mxu0 0
    %879 = vmatpush1.bf16.msra.mxu0 0
    %880 = vmatprep.subr.bf16.mxu0 0
    %881 = vmatpush1.bf16.msra.mxu0 0
    %882 = vmatprep.subr.bf16.mxu0 0
    %883 = vmatpush1.bf16.msra.mxu0 0
    %884 = vmatprep.subr.bf16.mxu0 0
    %885 = vmatpush1.bf16.msra.mxu0 0
    %886 = vmatprep.mubr.bf16.mxu0 0
    %887 = vmatmul.mubr.bf16.gmra.mrb[0].mxu0 %v784
    %v888 = vpop.f32.mrb[0].mxu0
    %v889 = vadd.f32 %v805, %v888
    %v890 = vpop.f32.mrb[0].mxu0
    %v891 = vpop.f32.mrb[0].mxu0
    %v892 = vadd.f32 %v805, %v891
    %v893 = vpop.f32.mrb[0].mxu0
    %894 = vdwg.mxu0
    %v895 = vmul.f32 %v889, %v889
    %v896 = vmul.f32 %v892, %v892
    %v897 = vmul.f32 %v889, %v895
    %v898 = vmul.f32 %v892, %v896
    %v899 = vmul.f32 %v897, 0.044715
    %v900 = vmul.f32 %v898, 0.044715
    %v901 = vadd.f32 %v889, %v899
    %v902 = vadd.f32 %v892, %v900
    %v903 = vmul.f32 %v901, 0.7978846
    %v904 = vmul.f32 %v902, 0.7978846
    %v905 = vtanh.pop %v903
    %v906 = vtanh.pop %v904
    %v907 = vadd.f32 %v905, 1.0
    %v908 = vadd.f32 %v906, 1.0
    %v909 = vmul.f32 %v907, 0.5
    %v910 = vmul.f32 %v908, 0.5
    %v911 = vmul.f32 %v889, %v909
    %v912 = vmul.f32 %v892, %v910
    %v913 = vpack.c.bf16 %v912, %v911
    %v914 = vld [vmem:[#allocation2 + $0x180] sm:$0xf]
    %v915 = vld [vmem:[#allocation2 + $0x184] sm:$0xf]
    %v916 = vld [vmem:[#allocation2 + $0x188] sm:$0xf]
    %v917 = vld [vmem:[#allocation2 + $0x18c] sm:$0xf]
    %v918 = vld [vmem:[#allocation2 + $0x190] sm:$0xf]
    %v919 = vld [vmem:[#allocation2 + $0x194] sm:$0xf]
    %v920 = vld [vmem:[#allocation2 + $0x198] sm:$0xf]
    %v921 = vld [vmem:[#allocation2 + $0x19c] sm:$0xf]
    %v922 = vld [vmem:[#allocation2 + $0x1a0] sm:$0xf]
    %v923 = vld [vmem:[#allocation2 + $0x1a4] sm:$0xf]
    %v924 = vld [vmem:[#allocation2 + $0x1a8] sm:$0xf]
    %v925 = vld [vmem:[#allocation2 + $0x1ac] sm:$0xf]
    %v926 = vld [vmem:[#allocation2 + $0x1b0] sm:$0xf]
    %v927 = vld [vmem:[#allocation2 + $0x1b4] sm:$0xf]
    %v928 = vld [vmem:[#allocation2 + $0x1b8] sm:$0xf]
    %v929 = vld [vmem:[#allocation2 + $0x1bc] sm:$0xf]
    %v930 = vld [vmem:[%s2 + $0x5] sm:$0x1]
    %v931 = vlaneseq
    %v932 = vshrl.u32 %v931, 7
    %v933 = vsub.s32 0, %v932
    %v934 = vrot.slane %v930, %v933
    %v951 = vunpack.c.l.b16 %v914
    %v952 = vunpack.c.l.b16 %v915
    %v953 = vunpack.c.l.b16 %v916
    %v954 = vunpack.c.l.b16 %v917
    %v955 = vunpack.c.l.b16 %v918
    %v956 = vunpack.c.l.b16 %v919
    %v957 = vunpack.c.l.b16 %v920
    %v958 = vunpack.c.l.b16 %v921
    %v959 = vunpack.c.l.b16 %v922
    %v960 = vunpack.c.l.b16 %v923
    %v961 = vunpack.c.l.b16 %v924
    %v962 = vunpack.c.l.b16 %v925
    %v963 = vunpack.c.l.b16 %v926
    %v964 = vunpack.c.l.b16 %v927
    %v965 = vunpack.c.l.b16 %v928
    %v966 = vunpack.c.l.b16 %v929
    %v967 = vpack.c.b16 %v952, %v951
    %v968 = vpack.c.b16 %v954, %v953
    %v969 = vpack.c.b16 %v956, %v955
    %v970 = vpack.c.b16 %v958, %v957
    %v971 = vpack.c.b16 %v960, %v959
    %v972 = vpack.c.b16 %v962, %v961
    %v973 = vpack.c.b16 %v964, %v963
    %v974 = vpack.c.b16 %v966, %v965
    %983 = vmatprep.subr.bf16.mxu0 0
    %984 = vmatpush1.bf16.msra.mxu0 %v967
    %985 = vmatprep.subr.bf16.mxu0 0
    %986 = vmatpush1.bf16.msra.mxu0 %v968
    %987 = vmatprep.subr.bf16.mxu0 0
    %988 = vmatpush1.bf16.msra.mxu0 %v969
    %989 = vmatprep.subr.bf16.mxu0 0
    %990 = vmatpush1.bf16.msra.mxu0 %v970
    %991 = vmatprep.subr.bf16.mxu0 0
    %992 = vmatpush1.bf16.msra.mxu0 %v971
    %993 = vmatprep.subr.bf16.mxu0 0
    %994 = vmatpush1.bf16.msra.mxu0 %v972
    %995 = vmatprep.subr.bf16.mxu0 0
    %996 = vmatpush1.bf16.msra.mxu0 %v973
    %997 = vmatprep.subr.bf16.mxu0 0
    %998 = vmatpush1.bf16.msra.mxu0 %v974
    %999 = vmatprep.subr.bf16.mxu0 0
    %1000 = vmatpush1.bf16.msra.mxu0 0
    %1001 = vmatprep.subr.bf16.mxu0 0
    %1002 = vmatpush1.bf16.msra.mxu0 0
    %1003 = vmatprep.subr.bf16.mxu0 0
    %1004 = vmatpush1.bf16.msra.mxu0 0
    %1005 = vmatprep.subr.bf16.mxu0 0
    %1006 = vmatpush1.bf16.msra.mxu0 0
    %1007 = vmatprep.subr.bf16.mxu0 0
    %1008 = vmatpush1.bf16.msra.mxu0 0
    %1009 = vmatprep.subr.bf16.mxu0 0
    %1010 = vmatpush1.bf16.msra.mxu0 0
    %1011 = vmatprep.subr.bf16.mxu0 0
    %1012 = vmatpush1.bf16.msra.mxu0 0
    %1013 = vmatprep.subr.bf16.mxu0 0
    %1014 = vmatpush1.bf16.msra.mxu0 0
    %1015 = vmatprep.mubr.bf16.mxu0 0
    %1016 = vmatmul.mubr.bf16.gmra.mrb[0].mxu0 %v913
    %v1017 = vpop.f32.mrb[0].mxu0
    %v1018 = vadd.f32 %v934, %v1017
    %v1019 = vpop.f32.mrb[0].mxu0
    %v1020 = vpop.f32.mrb[0].mxu0
    %v1021 = vadd.f32 %v934, %v1020
    %v1022 = vpop.f32.mrb[0].mxu0
    %1023 = vdwg.mxu0
    %v1024 = vadd.f32 %v782, %v1018
    %v1025 = vadd.f32 %v783, %v1021
    %v1026 = vld [vmem:[%s2 + $0x8] sm:$0x1]
    %v1027 = vld [vmem:[%s2 + $0x9] sm:$0x1]
    %1028 = vadd.xlane.f32.xlu0 %v1024
    %v1029 = vpop.xlane.xlu0 %1028
    %1030 = vadd.xlane.f32.xlu0 %v1025
    %v1031 = vpop.xlane.xlu0 %1030
    %v1032 = vmul.f32 %v1029, 0.03125
    %v1033 = vmul.f32 %v1031, 0.03125
    %v1034 = vmul.f32 %v1024, %v1024
    %v1035 = vmul.f32 %v1025, %v1025
    %1036 = vadd.xlane.f32.xlu0 %v1034
    %v1037 = vpop.xlane.xlu0 %1036
    %1038 = vadd.xlane.f32.xlu0 %v1035
    %v1039 = vpop.xlane.xlu0 %1038
    %v1040 = vmul.f32 %v1037, 0.03125
    %v1041 = vmul.f32 %v1039, 0.03125
    %v1042 = vmul.f32 %v1032, %v1032
    %v1043 = vmul.f32 %v1033, %v1033
    %v1044 = vsub.f32 %v1040, %v1042
    %v1045 = vsub.f32 %v1041, %v1043
    %v1046 = vmax.f32 %v1044, 0.0
    %v1047 = vmax.f32 %v1045, 0.0
    %v1048 = vsub.f32 %v1024, %v1032
    %v1049 = vsub.f32 %v1025, %v1033
    %v1050 = vadd.f32 %v1046, 1e-12
    %v1051 = vadd.f32 %v1047, 1e-12
    %v1052 = vrsqrt.pop %v1050
    %v1053 = vrsqrt.pop %v1051
    %v1054 = vmul.f32 %v1048, %v1052
    %v1055 = vmul.f32 %v1049, %v1053
    %v1056 = vlaneseq
    %v1057 = vshrl.u32 %v1056, 7
    %v1058 = vsub.s32 0, %v1057
    %v1059 = vrot.slane %v1026, %v1058
    %v1060 = vmul.f32 %v1054, %v1059
    %v1061 = vmul.f32 %v1055, %v1059
    %v1062 = vlaneseq
    %v1063 = vshrl.u32 %v1062, 7
    %v1064 = vsub.s32 0, %v1063
    %v1065 = vrot.slane %v1027, %v1064
    %v1066 = vadd.f32 %v1060, %v1065
    %v1067 = vadd.f32 %v1061, %v1065
    %v1068 = vpack.c.bf16 %v1067, %v1066
    %v1069 = vld [vmem:[#allocation2 + $0x1c0] sm:$0xf]
    %v1070 = vld [vmem:[#allocation2 + $0x1c4] sm:$0xf]
    %v1071 = vld [vmem:[#allocation2 + $0x1c8] sm:$0xf]
    %v1072 = vld [vmem:[#allocation2 + $0x1cc] sm:$0xf]
    %v1073 = vld [vmem:[#allocation2 + $0x1d0] sm:$0xf]
    %v1074 = vld [vmem:[#allocation2 + $0x1d4] sm:$0xf]
    %v1075 = vld [vmem:[#allocation2 + $0x1d8] sm:$0xf]
    %v1076 = vld [vmem:[#allocation2 + $0x1dc] sm:$0xf]
    %v1077 = vld [vmem:[#allocation2 + $0x1e0] sm:$0xf]
    %v1078 = vld [vmem:[#allocation2 + $0x1e4] sm:$0xf]
    %v1079 = vld [vmem:[#allocation2 + $0x1e8] sm:$0xf]
    %v1080 = vld [vmem:[#allocation2 + $0x1ec] sm:$0xf]
    %v1081 = vld [vmem:[#allocation2 + $0x1f0] sm:$0xf]
    %v1082 = vld [vmem:[#allocation2 + $0x1f4] sm:$0xf]
    %v1083 = vld [vmem:[#allocation2 + $0x1f8] sm:$0xf]
    %v1084 = vld [vmem:[#allocation2 + $0x1fc] sm:$0xf]
    %v1085 = vld [vmem:[%s2 + $0xa] sm:$0x1]
    %v1086 = vlaneseq
    %v1087 = vshrl.u32 %v1086, 7
    %v1088 = vsub.s32 0, %v1087
    %v1089 = vrot.slane %v1085, %v1088
    %v1106 = vunpack.c.l.b16 %v1069
    %v1107 = vunpack.c.l.b16 %v1070
    %v1108 = vunpack.c.l.b16 %v1071
    %v1109 = vunpack.c.l.b16 %v1072
    %v1110 = vunpack.c.l.b16 %v1073
    %v1111 = vunpack.c.l.b16 %v1074
    %v1112 = vunpack.c.l.b16 %v1075
    %v1113 = vunpack.c.l.b16 %v1076
    %v1114 = vunpack.c.l.b16 %v1077
    %v1115 = vunpack.c.l.b16 %v1078
    %v1116 = vunpack.c.l.b16 %v1079
    %v1117 = vunpack.c.l.b16 %v1080
    %v1118 = vunpack.c.l.b16 %v1081
    %v1119 = vunpack.c.l.b16 %v1082
    %v1120 = vunpack.c.l.b16 %v1083
    %v1121 = vunpack.c.l.b16 %v1084
    %v1122 = vpack.c.b16 %v1107, %v1106
    %v1123 = vpack.c.b16 %v1109, %v1108
    %v1124 = vpack.c.b16 %v1111, %v1110
    %v1125 = vpack.c.b16 %v1113, %v1112
    %v1126 = vpack.c.b16 %v1115, %v1114
    %v1127 = vpack.c.b16 %v1117, %v1116
    %v1128 = vpack.c.b16 %v1119, %v1118
    %v1129 = vpack.c.b16 %v1121, %v1120
    %1138 = vmatprep.subr.bf16.mxu0 0
    %1139 = vmatpush1.bf16.msra.mxu0 %v1122
    %1140 = vmatprep.subr.bf16.mxu0 0
    %1141 = vmatpush1.bf16.msra.mxu0 %v1123
    %1142 = vmatprep.subr.bf16.mxu0 0
    %1143 = vmatpush1.bf16.msra.mxu0 %v1124
    %1144 = vmatprep.subr.bf16.mxu0 0
    %1145 = vmatpush1.bf16.msra.mxu0 %v1125
    %1146 = vmatprep.subr.bf16.mxu0 0
    %1147 = vmatpush1.bf16.msra.mxu0 %v1126
    %1148 = vmatprep.subr.bf16.mxu0 0
    %1149 = vmatpush1.bf16.msra.mxu0 %v1127
    %1150 = vmatprep.subr.bf16.mxu0 0
    %1151 = vmatpush1.bf16.msra.mxu0 %v1128
    %1152 = vmatprep.subr.bf16.mxu0 0
    %1153 = vmatpush1.bf16.msra.mxu0 %v1129
    %1154 = vmatprep.subr.bf16.mxu0 0
    %1155 = vmatpush1.bf16.msra.mxu0 0
    %1156 = vmatprep.subr.bf16.mxu0 0
    %1157 = vmatpush1.bf16.msra.mxu0 0
    %1158 = vmatprep.subr.bf16.mxu0 0
    %1159 = vmatpush1.bf16.msra.mxu0 0
    %1160 = vmatprep.subr.bf16.mxu0 0
    %1161 = vmatpush1.bf16.msra.mxu0 0
    %1162 = vmatprep.subr.bf16.mxu0 0
    %1163 = vmatpush1.bf16.msra.mxu0 0
    %1164 = vmatprep.subr.bf16.mxu0 0
    %1165 = vmatpush1.bf16.msra.mxu0 0
    %1166 = vmatprep.subr.bf16.mxu0 0
    %1167 = vmatpush1.bf16.msra.mxu0 0
    %1168 = vmatprep.subr.bf16.mxu0 0
    %1169 = vmatpush1.bf16.msra.mxu0 0
    %1170 = vmatprep.mubr.bf16.mxu0 0
    %1171 = vmatmul.mubr.bf16.gmra.mrb[0].mxu0 %v1068
    %v1172 = vpop.f32.mrb[0].mxu0
    %v1173 = vadd.f32 %v1089, %v1172
    %v1174 = vpop.f32.mrb[0].mxu0
    %v1175 = vpop.f32.mrb[0].mxu0
    %v1176 = vadd.f32 %v1089, %v1175
    %v1177 = vpop.f32.mrb[0].mxu0
    %1178 = vdwg.mxu0
    %v1179 = vld [vmem:[%s2 + $0xb] sm:$0x1]
    %v1180 = vld [vmem:[%s2 + $0xc] sm:$0x1]
    %1181 = vadd.xlane.f32.xlu0 %v1173
    %v1182 = vpop.xlane.xlu0 %1181
    %1183 = vadd.xlane.f32.xlu0 %v1176
    %v1184 = vpop.xlane.xlu0 %1183
    %v1185 = vmul.f32 %v1182, 0.03125
    %v1186 = vmul.f32 %v1184, 0.03125
    %v1187 = vmul.f32 %v1173, %v1173
    %v1188 = vmul.f32 %v1176, %v1176
    %1189 = vadd.xlane.f32.xlu0 %v1187
    %v1190 = vpop.xlane.xlu0 %1189
    %1191 = vadd.xlane.f32.xlu0 %v1188
    %v1192 = vpop.xlane.xlu0 %1191
    %v1193 = vmul.f32 %v1190, 0.03125
    %v1194 = vmul.f32 %v1192, 0.03125
    %v1195 = vmul.f32 %v1185, %v1185
    %v1196 = vmul.f32 %v1186, %v1186
    %v1197 = vsub.f32 %v1193, %v1195
    %v1198 = vsub.f32 %v1194, %v1196
    %v1199 = vmax.f32 %v1197, 0.0
    %v1200 = vmax.f32 %v1198, 0.0
    %v1201 = vsub.f32 %v1173, %v1185
    %v1202 = vsub.f32 %v1176, %v1186
    %v1203 = vadd.f32 %v1199, 1e-05
    %v1204 = vadd.f32 %v1200, 1e-05
    %v1205 = vrsqrt.pop %v1203
    %v1206 = vrsqrt.pop %v1204
    %v1207 = vmul.f32 %v1201, %v1205
    %v1208 = vmul.f32 %v1202, %v1206
    %v1209 = vlaneseq
    %v1210 = vshrl.u32 %v1209, 7
    %v1211 = vsub.s32 0, %v1210
    %v1212 = vrot.slane %v1179, %v1211
    %v1213 = vmul.f32 %v1207, %v1212
    %v1214 = vmul.f32 %v1208, %v1212
    %v1215 = vlaneseq
    %v1216 = vshrl.u32 %v1215, 7
    %v1217 = vsub.s32 0, %v1216
    %v1218 = vrot.slane %v1180, %v1217
    %v1219 = vadd.f32 %v1213, %v1218
    %v1220 = vadd.f32 %v1214, %v1218
    %v1221 = vmul.f32 %v1219, %v1219
    %v1222 = vmul.f32 %v1220, %v1220
    %v1223 = vmul.f32 %v1219, %v1221
    %v1224 = vmul.f32 %v1220, %v1222
    %v1225 = vmul.f32 %v1223, 0.044715
    %v1226 = vmul.f32 %v1224, 0.044715
    %v1227 = vadd.f32 %v1219, %v1225
    %v1228 = vadd.f32 %v1220, %v1226
    %v1229 = vmul.f32 %v1227, 0.7978846
    %v1230 = vmul.f32 %v1228, 0.7978846
    %v1231 = vtanh.pop %v1229
    %v1232 = vtanh.pop %v1230
    %v1233 = vadd.f32 %v1231, 1.0
    %v1234 = vadd.f32 %v1232, 1.0
    %v1235 = vmul.f32 %v1233, 0.5
    %v1236 = vmul.f32 %v1234, 0.5
    %v1237 = vmul.f32 %v1219, %v1235
    %v1238 = vmul.f32 %v1220, %v1236
    %v1239 = vld [vmem:[#allocation2 + $0x200] sm:$0xf]
    %v1240 = vld [vmem:[#allocation2 + $0x204] sm:$0xf]
    %v1241 = vld [vmem:[#allocation2 + $0x208] sm:$0xf]
    %v1242 = vld [vmem:[#allocation2 + $0x20c] sm:$0xf]
    %v1243 = vld [vmem:[#allocation2 + $0x210] sm:$0xf]
    %v1244 = vld [vmem:[#allocation2 + $0x214] sm:$0xf]
    %v1245 = vld [vmem:[#allocation2 + $0x218] sm:$0xf]
    %v1246 = vld [vmem:[#allocation2 + $0x21c] sm:$0xf]
    %v1247 = vld [vmem:[#allocation2 + $0x220] sm:$0xf]
    %v1248 = vld [vmem:[#allocation2 + $0x224] sm:$0xf]
    %v1249 = vld [vmem:[#allocation2 + $0x228] sm:$0xf]
    %v1250 = vld [vmem:[#allocation2 + $0x22c] sm:$0xf]
    %v1251 = vld [vmem:[#allocation2 + $0x230] sm:$0xf]
    %v1252 = vld [vmem:[#allocation2 + $0x234] sm:$0xf]
    %v1253 = vld [vmem:[#allocation2 + $0x238] sm:$0xf]
    %v1254 = vld [vmem:[#allocation2 + $0x23c] sm:$0xf]
    %v1255 = vld [vmem:[%s2 + $0xe] sm:$0x1]
    %v1256 = vlaneseq
    %v1257 = vshrl.u32 %v1256, 7
    %v1258 = vsub.s32 0, %v1257
    %v1259 = vrot.slane %v1255, %v1258
    %v1276 = vunpack.c.l.b16 %v1239
    %v1277 = vunpack.c.l.b16 %v1240
    %v1278 = vunpack.c.l.b16 %v1241
    %v1279 = vunpack.c.l.b16 %v1242
    %v1280 = vunpack.c.l.b16 %v1243
    %v1281 = vunpack.c.l.b16 %v1244
    %v1282 = vunpack.c.l.b16 %v1245
    %v1283 = vunpack.c.l.b16 %v1246
    %v1284 = vunpack.c.l.b16 %v1247
    %v1285 = vunpack.c.l.b16 %v1248
    %v1286 = vunpack.c.l.b16 %v1249
    %v1287 = vunpack.c.l.b16 %v1250
    %v1288 = vunpack.c.l.b16 %v1251
    %v1289 = vunpack.c.l.b16 %v1252
    %v1290 = vunpack.c.l.b16 %v1253
    %v1291 = vunpack.c.l.b16 %v1254
    %v1292 = vpack.c.b16 %v1277, %v1276
    %v1293 = vpack.c.b16 %v1279, %v1278
    %v1294 = vpack.c.b16 %v1281, %v1280
    %v1295 = vpack.c.b16 %v1283, %v1282
    %v1296 = vpack.c.b16 %v1285, %v1284
    %v1297 = vpack.c.b16 %v1287, %v1286
    %v1298 = vpack.c.b16 %v1289, %v1288
    %v1299 = vpack.c.b16 %v1291, %v1290
    %1308 = vmatprep.subr.bf16.mxu0 0
    %1309 = vmatpush1.bf16.msra.mxu0 %v1292
    %1310 = vmatprep.subr.bf16.mxu0 0
    %1311 = vmatpush1.bf16.msra.mxu0 %v1293
    %1312 = vmatprep.subr.bf16.mxu0 0
    %1313 = vmatpush1.bf16.msra.mxu0 %v1294
    %1314 = vmatprep.subr.bf16.mxu0 0
    %1315 = vmatpush1.bf16.msra.mxu0 %v1295
    %1316 = vmatprep.subr.bf16.mxu0 0
    %1317 = vmatpush1.bf16.msra.mxu0 %v1296
    %1318 = vmatprep.subr.bf16.mxu0 0
    %1319 = vmatpush1.bf16.msra.mxu0 %v1297
    %1320 = vmatprep.subr.bf16.mxu0 0
    %1321 = vmatpush1.bf16.msra.mxu0 %v1298
    %1322 = vmatprep.subr.bf16.mxu0 0
    %1323 = vmatpush1.bf16.msra.mxu0 %v1299
    %1324 = vmatprep.subr.bf16.mxu0 0
    %1325 = vmatpush1.bf16.msra.mxu0 0
    %1326 = vmatprep.subr.bf16.mxu0 0
    %1327 = vmatpush1.bf16.msra.mxu0 0
    %1328 = vmatprep.subr.bf16.mxu0 0
    %1329 = vmatpush1.bf16.msra.mxu0 0
    %1330 = vmatprep.subr.bf16.mxu0 0
    %1331 = vmatpush1.bf16.msra.mxu0 0
    %1332 = vmatprep.subr.bf16.mxu0 0
    %1333 = vmatpush1.bf16.msra.mxu0 0
    %1334 = vmatprep.subr.bf16.mxu0 0
    %1335 = vmatpush1.bf16.msra.mxu0 0
    %1336 = vmatprep.subr.bf16.mxu0 0
    %1337 = vmatpush1.bf16.msra.mxu0 0
    %1338 = vmatprep.subr.bf16.mxu0 0
    %1339 = vmatpush1.bf16.msra.mxu0 0
    %1340 = vmatprep.mubr.bf16.mxu0 0
    %1341 = vmatmul.mubr.bf16.gmra.mrb[0].mxu0 %v1068
    %v1342 = vpop.f32.mrb[0].mxu0
    %v1343 = vadd.f32 %v1259, %v1342
    %v1344 = vpop.f32.mrb[0].mxu0
    %v1345 = vpop.f32.mrb[0].mxu0
    %v1346 = vadd.f32 %v1259, %v1345
    %v1347 = vpop.f32.mrb[0].mxu0
    %1348 = vdwg.mxu0
    %v1349 = vld [vmem:[%s2 + $0xf] sm:$0x1]
    %v1350 = vld [vmem:[%s2 + $0x10] sm:$0x1]
    %1351 = vadd.xlane.f32.xlu0 %v1343
    %v1352 = vpop.xlane.xlu0 %1351
    %1353 = vadd.xlane.f32.xlu0 %v1346
    %v1354 = vpop.xlane.xlu0 %1353
    %v1355 = vmul.f32 %v1352, 0.03125
    %v1356 = vmul.f32 %v1354, 0.03125
    %v1357 = vmul.f32 %v1343, %v1343
    %v1358 = vmul.f32 %v1346, %v1346
    %1359 = vadd.xlane.f32.xlu0 %v1357
    %v1360 = vpop.xlane.xlu0 %1359
    %1361 = vadd.xlane.f32.xlu0 %v1358
    %v1362 = vpop.xlane.xlu0 %1361
    %v1363 = vmul.f32 %v1360, 0.03125
    %v1364 = vmul.f32 %v1362, 0.03125
    %v1365 = vmul.f32 %v1355, %v1355
    %v1366 = vmul.f32 %v1356, %v1356
    %v1367 = vsub.f32 %v1363, %v1365
    %v1368 = vsub.f32 %v1364, %v1366
    %v1369 = vmax.f32 %v1367, 0.0
    %v1370 = vmax.f32 %v1368, 0.0
    %v1371 = vsub.f32 %v1343, %v1355
    %v1372 = vsub.f32 %v1346, %v1356
    %v1373 = vadd.f32 %v1369, 1e-05
    %v1374 = vadd.f32 %v1370, 1e-05
    %v1375 = vrsqrt.pop %v1373
    %v1376 = vrsqrt.pop %v1374
    %v1377 = vmul.f32 %v1371, %v1375
    %v1378 = vmul.f32 %v1372, %v1376
    %v1379 = vlaneseq
    %v1380 = vshrl.u32 %v1379, 7
    %v1381 = vsub.s32 0, %v1380
    %v1382 = vrot.slane %v1349, %v1381
    %v1383 = vmul.f32 %v1377, %v1382
    %v1384 = vmul.f32 %v1378, %v1382
    %v1385 = vlaneseq
    %v1386 = vshrl.u32 %v1385, 7
    %v1387 = vsub.s32 0, %v1386
    %v1388 = vrot.slane %v1350, %v1387
    %v1389 = vadd.f32 %v1383, %v1388
    %v1390 = vadd.f32 %v1384, %v1388
    %v1391 = vmul.f32 %v1389, %v1389
    %v1392 = vmul.f32 %v1390, %v1390
    %v1393 = vmul.f32 %v1389, %v1391
    %v1394 = vmul.f32 %v1390, %v1392
    %v1395 = vmul.f32 %v1393, 0.044715
    %v1396 = vmul.f32 %v1394, 0.044715
    %v1397 = vadd.f32 %v1389, %v1395
    %v1398 = vadd.f32 %v1390, %v1396
    %v1399 = vmul.f32 %v1397, 0.7978846
    %v1400 = vmul.f32 %v1398, 0.7978846
    %v1401 = vtanh.pop %v1399
    %v1402 = vtanh.pop %v1400
    %v1403 = vadd.f32 %v1401, 1.0
    %v1404 = vadd.f32 %v1402, 1.0
    %v1405 = vmul.f32 %v1403, 0.5
    %v1406 = vmul.f32 %v1404, 0.5
    %v1407 = vmul.f32 %v1389, %v1405
    %v1408 = vmul.f32 %v1390, %v1406
    %v1409 = vpack.c.bf16 %v1238, %v1237
    %v1410 = vld [vmem:[#allocation2 + $0x240] sm:$0xf]
    %v1411 = vld [vmem:[#allocation2 + $0x244] sm:$0xf]
    %v1412 = vld [vmem:[#allocation2 + $0x248] sm:$0xf]
    %v1413 = vld [vmem:[#allocation2 + $0x24c] sm:$0xf]
    %v1414 = vld [vmem:[#allocation2 + $0x250] sm:$0xf]
    %v1415 = vld [vmem:[#allocation2 + $0x254] sm:$0xf]
    %v1416 = vld [vmem:[#allocation2 + $0x258] sm:$0xf]
    %v1417 = vld [vmem:[#allocation2 + $0x25c] sm:$0xf]
    %v1418 = vld [vmem:[#allocation2 + $0x260] sm:$0xf]
    %v1419 = vld [vmem:[#allocation2 + $0x264] sm:$0xf]
    %v1420 = vld [vmem:[#allocation2 + $0x268] sm:$0xf]
    %v1421 = vld [vmem:[#allocation2 + $0x26c] sm:$0xf]
    %v1422 = vld [vmem:[#allocation2 + $0x270] sm:$0xf]
    %v1423 = vld [vmem:[#allocation2 + $0x274] sm:$0xf]
    %v1424 = vld [vmem:[#allocation2 + $0x278] sm:$0xf]
    %v1425 = vld [vmem:[#allocation2 + $0x27c] sm:$0xf]
    %v1426 = vld [vmem:[%s2 + $0xd] sm:$0x1]
    %v1427 = vlaneseq
    %v1428 = vshrl.u32 %v1427, 7
    %v1429 = vsub.s32 0, %v1428
    %v1430 = vrot.slane %v1426, %v1429
    %v1447 = vunpack.c.l.b16 %v1410
    %v1448 = vunpack.c.l.b16 %v1411
    %v1449 = vunpack.c.l.b16 %v1412
    %v1450 = vunpack.c.l.b16 %v1413
    %v1451 = vunpack.c.l.b16 %v1414
    %v1452 = vunpack.c.l.b16 %v1415
    %v1453 = vunpack.c.l.b16 %v1416
    %v1454 = vunpack.c.l.b16 %v1417
    %v1455 = vunpack.c.l.b16 %v1418
    %v1456 = vunpack.c.l.b16 %v1419
    %v1457 = vunpack.c.l.b16 %v1420
    %v1458 = vunpack.c.l.b16 %v1421
    %v1459 = vunpack.c.l.b16 %v1422
    %v1460 = vunpack.c.l.b16 %v1423
    %v1461 = vunpack.c.l.b16 %v1424
    %v1462 = vunpack.c.l.b16 %v1425
    %v1463 = vpack.c.b16 %v1448, %v1447
    %v1464 = vpack.c.b16 %v1450, %v1449
    %v1465 = vpack.c.b16 %v1452, %v1451
    %v1466 = vpack.c.b16 %v1454, %v1453
    %v1467 = vpack.c.b16 %v1456, %v1455
    %v1468 = vpack.c.b16 %v1458, %v1457
    %v1469 = vpack.c.b16 %v1460, %v1459
    %v1470 = vpack.c.b16 %v1462, %v1461
    %1479 = vmatprep.subr.bf16.mxu0 0
    %1480 = vmatpush1.bf16.msra.mxu0 %v1463
    %1481 = vmatprep.subr.bf16.mxu0 0
    %1482 = vmatpush1.bf16.msra.mxu0 %v1464
    %1483 = vmatprep.subr.bf16.mxu0 0
    %1484 = vmatpush1.bf16.msra.mxu0 %v1465
    %1485 = vmatprep.subr.bf16.mxu0 0
    %1486 = vmatpush1.bf16.msra.mxu0 %v1466
    %1487 = vmatprep.subr.bf16.mxu0 0
    %1488 = vmatpush1.bf16.msra.mxu0 %v1467
    %1489 = vmatprep.subr.bf16.mxu0 0
    %1490 = vmatpush1.bf16.msra.mxu0 %v1468
    %1491 = vmatprep.subr.bf16.mxu0 0
    %1492 = vmatpush1.bf16.msra.mxu0 %v1469
    %1493 = vmatprep.subr.bf16.mxu0 0
    %1494 = vmatpush1.bf16.msra.mxu0 %v1470
    %1495 = vmatprep.subr.bf16.mxu0 0
    %1496 = vmatpush1.bf16.msra.mxu0 0
    %1497 = vmatprep.subr.bf16.mxu0 0
    %1498 = vmatpush1.bf16.msra.mxu0 0
    %1499 = vmatprep.subr.bf16.mxu0 0
    %1500 = vmatpush1.bf16.msra.mxu0 0
    %1501 = vmatprep.subr.bf16.mxu0 0
    %1502 = vmatpush1.bf16.msra.mxu0 0
    %1503 = vmatprep.subr.bf16.mxu0 0
    %1504 = vmatpush1.bf16.msra.mxu0 0
    %1505 = vmatprep.subr.bf16.mxu0 0
    %1506 = vmatpush1.bf16.msra.mxu0 0
    %1507 = vmatprep.subr.bf16.mxu0 0
    %1508 = vmatpush1.bf16.msra.mxu0 0
    %1509 = vmatprep.subr.bf16.mxu0 0
    %1510 = vmatpush1.bf16.msra.mxu0 0
    %1511 = vmatprep.mubr.bf16.mxu0 0
    %1512 = vmatmul.mubr.bf16.gmra.mrb[0].mxu0 %v1409
    %v1513 = vpop.f32.mrb[0].mxu0
    %v1514 = vadd.f32 %v1430, %v1513
    %v1515 = vpop.f32.mrb[0].mxu0
    %v1516 = vpop.f32.mrb[0].mxu0
    %v1517 = vadd.f32 %v1430, %v1516
    %v1518 = vpop.f32.mrb[0].mxu0
    %1519 = vdwg.mxu0
    %v1520 = vpack.c.bf16 %v1408, %v1407
    %v1521 = vld [vmem:[#allocation2 + $0x280] sm:$0xf]
    %v1522 = vld [vmem:[#allocation2 + $0x284] sm:$0xf]
    %v1523 = vld [vmem:[#allocation2 + $0x288] sm:$0xf]
    %v1524 = vld [vmem:[#allocation2 + $0x28c] sm:$0xf]
    %v1525 = vld [vmem:[#allocation2 + $0x290] sm:$0xf]
    %v1526 = vld [vmem:[#allocation2 + $0x294] sm:$0xf]
    %v1527 = vld [vmem:[#allocation2 + $0x298] sm:$0xf]
    %v1528 = vld [vmem:[#allocation2 + $0x29c] sm:$0xf]
    %v1529 = vld [vmem:[#allocation2 + $0x2a0] sm:$0xf]
    %v1530 = vld [vmem:[#allocation2 + $0x2a4] sm:$0xf]
    %v1531 = vld [vmem:[#allocation2 + $0x2a8] sm:$0xf]
    %v1532 = vld [vmem:[#allocation2 + $0x2ac] sm:$0xf]
    %v1533 = vld [vmem:[#allocation2 + $0x2b0] sm:$0xf]
    %v1534 = vld [vmem:[#allocation2 + $0x2b4] sm:$0xf]
    %v1535 = vld [vmem:[#allocation2 + $0x2b8] sm:$0xf]
    %v1536 = vld [vmem:[#allocation2 + $0x2bc] sm:$0xf]
    %v1537 = vld [vmem:[%s2 + $0x11] sm:$0x1]
    %v1538 = vlaneseq
    %v1539 = vshrl.u32 %v1538, 7
    %v1540 = vsub.s32 0, %v1539
    %v1541 = vrot.slane %v1537, %v1540
    %v1558 = vunpack.c.l.b16 %v1521
    %v1559 = vunpack.c.l.b16 %v1522
    %v1560 = vunpack.c.l.b16 %v1523
    %v1561 = vunpack.c.l.b16 %v1524
    %v1562 = vunpack.c.l.b16 %v1525
    %v1563 = vunpack.c.l.b16 %v1526
    %v1564 = vunpack.c.l.b16 %v1527
    %v1565 = vunpack.c.l.b16 %v1528
    %v1566 = vunpack.c.l.b16 %v1529
    %v1567 = vunpack.c.l.b16 %v1530
    %v1568 = vunpack.c.l.b16 %v1531
    %v1569 = vunpack.c.l.b16 %v1532
    %v1570 = vunpack.c.l.b16 %v1533
    %v1571 = vunpack.c.l.b16 %v1534
    %v1572 = vunpack.c.l.b16 %v1535
    %v1573 = vunpack.c.l.b16 %v1536
    %v1574 = vpack.c.b16 %v1559, %v1558
    %v1575 = vpack.c.b16 %v1561, %v1560
    %v1576 = vpack.c.b16 %v1563, %v1562
    %v1577 = vpack.c.b16 %v1565, %v1564
    %v1578 = vpack.c.b16 %v1567, %v1566
    %v1579 = vpack.c.b16 %v1569, %v1568
    %v1580 = vpack.c.b16 %v1571, %v1570
    %v1581 = vpack.c.b16 %v1573, %v1572
    %1590 = vmatprep.subr.bf16.mxu0 0
    %1591 = vmatpush1.bf16.msra.mxu0 %v1574
    %1592 = vmatprep.subr.bf16.mxu0 0
    %1593 = vmatpush1.bf16.msra.mxu0 %v1575
    %1594 = vmatprep.subr.bf16.mxu0 0
    %1595 = vmatpush1.bf16.msra.mxu0 %v1576
    %1596 = vmatprep.subr.bf16.mxu0 0
    %1597 = vmatpush1.bf16.msra.mxu0 %v1577
    %1598 = vmatprep.subr.bf16.mxu0 0
    %1599 = vmatpush1.bf16.msra.mxu0 %v1578
    %1600 = vmatprep.subr.bf16.mxu0 0
    %1601 = vmatpush1.bf16.msra.mxu0 %v1579
    %1602 = vmatprep.subr.bf16.mxu0 0
    %1603 = vmatpush1.bf16.msra.mxu0 %v1580
    %1604 = vmatprep.subr.bf16.mxu0 0
    %1605 = vmatpush1.bf16.msra.mxu0 %v1581
    %1606 = vmatprep.subr.bf16.mxu0 0
    %1607 = vmatpush1.bf16.msra.mxu0 0
    %1608 = vmatprep.subr.bf16.mxu0 0
    %1609 = vmatpush1.bf16.msra.mxu0 0
    %1610 = vmatprep.subr.bf16.mxu0 0
    %1611 = vmatpush1.bf16.msra.mxu0 0
    %1612 = vmatprep.subr.bf16.mxu0 0
    %1613 = vmatpush1.bf16.msra.mxu0 0
    %1614 = vmatprep.subr.bf16.mxu0 0
    %1615 = vmatpush1.bf16.msra.mxu0 0
    %1616 = vmatprep.subr.bf16.mxu0 0
    %1617 = vmatpush1.bf16.msra.mxu0 0
    %1618 = vmatprep.subr.bf16.mxu0 0
    %1619 = vmatpush1.bf16.msra.mxu0 0
    %1620 = vmatprep.subr.bf16.mxu0 0
    %1621 = vmatpush1.bf16.msra.mxu0 0
    %1622 = vmatprep.mubr.bf16.mxu0 0
    %1623 = vmatmul.mubr.bf16.gmra.mrb[0].mxu0 %v1520
    %v1624 = vpop.f32.mrb[0].mxu0
    %v1625 = vadd.f32 %v1541, %v1624
    %v1626 = vpop.f32.mrb[0].mxu0
    %v1627 = vpop.f32.mrb[0].mxu0
    %v1628 = vadd.f32 %v1541, %v1627
    %v1629 = vpop.f32.mrb[0].mxu0
    %1630 = vdwg.mxu0
    %v1631 = vld [vmem:[%s2 + $0x12] sm:$0x1]
    %vm1632 = vcmp.lt.s32.totalorder %v32, 7
    %v1633 = vsel %vm1632, 0.0, -1e+30
    %1634 = vset.pattern.permute.xlu0 0
    %1635 = vperm.xlu0 %1634, %v36
    %v1636 = vpop.permute.xlu0 %1635
    %1637 = vset.pattern.permute.xlu0 0
    %1638 = vperm.xlu0 %1637, %v37
    %v1639 = vpop.permute.xlu0 %1638
    %vm1640 = vcmp.eq.s32.totalorder %v32, %v1636
    %vm1641 = vcmp.eq.s32.totalorder %v32, %v1639
    %v1642 = vsel %vm1640, 1, 0
    %v1643 = vsel %vm1641, 1, 0
    %v1644 = vcvt.s32.f32 %v1642
    %v1645 = vcvt.s32.f32 %v1643
    %v1646 = vadd.f32 %v1514, %v1633
    %v1647 = vadd.f32 %v1517, %v1633
    %1648 = vmax.xlane.f32.xlu0 %v1646
    %v1649 = vpop.xlane.xlu0 %1648
    %1650 = vmax.xlane.f32.xlu0 %v1647
    %v1651 = vpop.xlane.xlu0 %1650
    %v1652 = vsub.f32 %v1646, %v1649
    %v1653 = vsub.f32 %v1647, %v1651
    %v1654 = vmul.f32 %v1652, 1.442695
    %v1655 = vpow.pop %v1654
    %v1656 = vmul.f32 %v1653, 1.442695
    %v1657 = vpow.pop %v1656
    %1658 = vadd.xlane.f32.xlu0 %v1655
    %v1659 = vpop.xlane.xlu0 %1658
    %1660 = vadd.xlane.f32.xlu0 %v1657
    %v1661 = vpop.xlane.xlu0 %1660
    %v1662 = vlog2.pop %v1659
    %v1663 = vmul.f32 %v1662, 0.6931472
    %v1664 = vlog2.pop %v1661
    %v1665 = vmul.f32 %v1664, 0.6931472
    %v1666 = vadd.f32 %v1663, %v1649
    %v1667 = vadd.f32 %v1665, %v1651
    %v1668 = vmul.f32 %v1514, %v1644
    %v1669 = vmul.f32 %v1517, %v1645
    %1670 = vadd.xlane.f32.xlu0 %v1668
    %v1671 = vpop.xlane.xlu0 %1670
    %1672 = vadd.xlane.f32.xlu0 %v1669
    %v1673 = vpop.xlane.xlu0 %1672
    %v1674 = vlaneseq
    %v1675 = vshrl.u32 %v1674, 7
    %v1676 = vsub.s32 0, %v1675
    %v1677 = vrot.slane %v1631, %v1676
    %v1678 = vmul.f32 %v1677, %v1644
    %v1679 = vmul.f32 %v1677, %v1645
    %1680 = vadd.xlane.f32.xlu0 %v1678
    %v1681 = vpop.xlane.xlu0 %1680
    %1682 = vadd.xlane.f32.xlu0 %v1679
    %v1683 = vpop.xlane.xlu0 %1682
    %v1684 = vmul.f32 %v29, %v1681
    %v1685 = vmul.f32 %v30, %v1683
    %v1686 = vsub.f32 %v1666, %v1671
    %v1687 = vsub.f32 %v1667, %v1673
    %v1688 = vmul.f32 %v1684, %v1686
    %v1689 = vmul.f32 %v1685, %v1687
    %1690 = vset.pattern.permute.xlu0 1
    %1691 = vperm.xlu0 %1690, %v36
    %v1692 = vpop.permute.xlu0 %1691
    %1693 = vset.pattern.permute.xlu0 1
    %1694 = vperm.xlu0 %1693, %v37
    %v1695 = vpop.permute.xlu0 %1694
    %vm1696 = vcmp.eq.s32.totalorder %v32, %v1692
    %vm1697 = vcmp.eq.s32.totalorder %v32, %v1695
    %v1698 = vsel %vm1696, 1, 0
    %v1699 = vsel %vm1697, 1, 0
    %v1700 = vcvt.s32.f32 %v1698
    %v1701 = vcvt.s32.f32 %v1699
    %v1702 = vadd.f32 %v1625, %v1633
    %v1703 = vadd.f32 %v1628, %v1633
    %1704 = vmax.xlane.f32.xlu0 %v1702
    %v1705 = vpop.xlane.xlu0 %1704
    %1706 = vmax.xlane.f32.xlu0 %v1703
    %v1707 = vpop.xlane.xlu0 %1706
    %v1708 = vsub.f32 %v1702, %v1705
    %v1709 = vsub.f32 %v1703, %v1707
    %v1710 = vmul.f32 %v1708, 1.442695
    %v1711 = vpow.pop %v1710
    %v1712 = vmul.f32 %v1709, 1.442695
    %v1713 = vpow.pop %v1712
    %1714 = vadd.xlane.f32.xlu0 %v1711
    %v1715 = vpop.xlane.xlu0 %1714
    %1716 = vadd.xlane.f32.xlu0 %v1713
    %v1717 = vpop.xlane.xlu0 %1716
    %v1718 = vlog2.pop %v1715
    %v1719 = vmul.f32 %v1718, 0.6931472
    %v1720 = vlog2.pop %v1717
    %v1721 = vmul.f32 %v1720, 0.6931472
    %v1722 = vadd.f32 %v1719, %v1705
    %v1723 = vadd.f32 %v1721, %v1707
    %v1724 = vmul.f32 %v1625, %v1700
    %v1725 = vmul.f32 %v1628, %v1701
    %1726 = vadd.xlane.f32.xlu0 %v1724
    %v1727 = vpop.xlane.xlu0 %1726
    %1728 = vadd.xlane.f32.xlu0 %v1725
    %v1729 = vpop.xlane.xlu0 %1728
    %v1730 = vmul.f32 %v1677, %v1700
    %v1731 = vmul.f32 %v1677, %v1701
    %1732 = vadd.xlane.f32.xlu0 %v1730
    %v1733 = vpop.xlane.xlu0 %1732
    %1734 = vadd.xlane.f32.xlu0 %v1731
    %v1735 = vpop.xlane.xlu0 %1734
    %v1736 = vmul.f32 %v29, %v1733
    %v1737 = vmul.f32 %v30, %v1735
    %v1738 = vsub.f32 %v1722, %v1727
    %v1739 = vsub.f32 %v1723, %v1729
    %v1740 = vmul.f32 %v1736, %v1738
    %v1741 = vmul.f32 %v1737, %v1739
    %1744 = vrot.lane.b32.xlu0 %v1740, 127
    %v1745 = vpop.permute.xlu0 %1744
    %1746 = vrot.lane.b32.xlu0 %v1741, 127
    %v1747 = vpop.permute.xlu0 %1746
    %v1750 = vadd.f32 %v1688, %v1745
    %v1751 = vadd.f32 %v1689, %v1747
    %vm1752 = vcmask 23568
    %v1753 = vsel %vm1752, %v1750, 0.0
    %v1754 = vsel %vm1752, %v1751, 0.0
    %v1755 = vadd.f32 %v1753, %v1754
    %v1756 = vrot.slane %v1755, 4
    %v1757 = vadd.f32 %v1755, %v1756
    %v1758 = vrot.slane %v1757, 2
    %v1759 = vadd.f32 %v1757, %v1758
    %v1760 = vrot.slane %v1759, 1
    %v1761 = vadd.f32 %v1759, %v1760
    %v1762 = vmul.f32 %v1761, 0.5
    %vm1763 = vcmp.eq.s32.totalorder %v34, 0
    %vm1764 = vcmp.eq.s32.totalorder %v35, 0
    %vm1765 = vcmp.eq.s32.totalorder %v32, 127
    %vm1766 = vmand %vm1763, %vm1765
    %vm1767 = vmand %vm1764, %vm1765
    %1769 = vset.pattern.permute.xlu0 2
    %1770 = vperm.xlu0 %1769, %v1762
    %v1771 = vpop.permute.xlu0 %1770
    %v1773 = vsel %vm1766, %v1771, %v1514
    %v1774 = vsel %vm1767, %v1771, %v1517
    %1775 = vst [vmem:[%s3] sm:$0xff] %v1773
    %1776 = vst [vmem:[%s3 + $0x8] sm:$0xff] %v1774
    %1777 = vst [vmem:[%s3 + $0x10] sm:$0xff] %v1625
    %1778 = vst [vmem:[%s3 + $0x18] sm:$0xff] %v1628
    // Predicated region
    $region18: #{entity_model_forward.1} parent=1 // pred_check
      _
    $region19: #{entity_model_forward.1} parent=1 // pred_check_branch
      %1780 = sbr.rel (0) target = $region21
    $region20: #{entity_model_forward.1} parent=1 // pred_region
      _
    $region21: #{entity_model_forward.1} parent=1 // pred_fallthru
      _
    // Predicated region
    $region22: #{entity_model_forward.1} parent=1 // pred_check
      _
    $region23: #{entity_model_forward.1} parent=1 // pred_check_branch
      %1782 = sbr.rel (0) target = $region25
    $region24: #{entity_model_forward.1} parent=1 // pred_region
      _
    $region25: #{entity_model_forward.1} parent=1 // pred_fallthru
      _
    %1783 = vsyncpa [#allocation3], 1

</llo_original>
